<compile_context>
chip_gen: v5e
topology: v5e:2x2
jax: 0.10.0
libtpu: 0.0.40
codegen_flags: <defaults>
</compile_context>

<pallas_src>
import jax
import jax.numpy as jnp
from jax.experimental import pallas as pl
from jax.experimental.pallas import tpu as pltpu


_MAX_STATIC_UNROLL = 4  # above this, use fori_loop for the hidden-layer chain


def _round_up(x, m):
    return ((x + m - 1) // m) * m


# ---------------------------------------------------------------------------
# Kernel
# ---------------------------------------------------------------------------
def _mlp_quantile_kernel(x_ref, hw_ref, hb_ref, ow_ref, ob_ref, o_ref):
    """Fused MLP forward on one batch tile.

    x_ref : (TB, D)      activation tile (UNPADDED feature dim)
    hw_ref: (L, Dp, Dp)  stacked hidden weights (in x out), resident in VMEM
    hb_ref: (L, 1, Dp)   stacked hidden biases
    ow_ref: (Dp, Op)     output-layer weight (in x out)
    ob_ref: (1, Op)      output-layer bias
    o_ref : (TB, Op)     output tile (lane-dense, padded to 128)
    """
    num_layers = hw_ref.shape[0]
    d_in = x_ref.shape[1]
    act_dtype = x_ref.dtype

    # Layer 0: (TB, D) @ (D, Dp). D is the true feature count; the static
    # sublane slice of hw_ref avoids any padded-x traffic from HBM.
    y = jnp.dot(x_ref[...], hw_ref[0, :d_in, :],
                preferred_element_type=jnp.float32)
    y = y + hb_ref[0]                      # (1, Dp) broadcast over rows
    h = jnp.maximum(y, 0.0).astype(act_dtype)

    # Remaining hidden layers: (TB, Dp) @ (Dp, Dp).
    if num_layers <= _MAX_STATIC_UNROLL:
        for i in range(1, num_layers):
            y = jnp.dot(h, hw_ref[i], preferred_element_type=jnp.float32)
            y = y + hb_ref[i]
            h = jnp.maximum(y, 0.0).astype(act_dtype)
    else:
        def body(i, h_c):
            y_c = jnp.dot(h_c, hw_ref[i], preferred_element_type=jnp.float32)
            y_c = y_c + hb_ref[i]
            return jnp.maximum(y_c, 0.0).astype(act_dtype)
        h = jax.lax.fori_loop(1, num_layers, body, h, unroll=True)

    out = jnp.dot(h, ow_ref[...], preferred_element_type=jnp.float32)
    out = out + ob_ref[...]
    o_ref[...] = out.astype(o_ref.dtype)


# ---------------------------------------------------------------------------
# One-time parameter preparation (OFF the per-call hot path)
# ---------------------------------------------------------------------------
def prepare_params(hidden_w, hidden_b, out_w, out_b):
    """Zero-pad parameters to lane-dense (multiple-of-128) shapes ONCE.

    Zero padding is exact: padded feature columns stay 0 through the ReLU
    layers (zero weight columns + zero bias) and contribute 0 to every dot.
    Note: for production-sized layers (D/O >= 256) padding to multiples of 256
    would fully feed the 2x256x256 MXU on v6e/v7x; 128 is kept here since the
    demo dims are tiny and the kernel is DMA-bound at these sizes.
    """
    L, D, _ = hidden_w.shape
    O = out_w.shape[1]
    Dp = _round_up(D, 128)
    Op = _round_up(O, 128)

    hwp = jnp.zeros((L, Dp, Dp), hidden_w.dtype).at[:, :D, :D].set(hidden_w)
    hbp = jnp.zeros((L, 1, Dp), hidden_b.dtype).at[:, :, :D].set(hidden_b)
    owp = jnp.zeros((Dp, Op), out_w.dtype).at[:D, :O].set(out_w)
    obp = jnp.zeros((1, Op), out_b.dtype).at[:, :O].set(out_b)
    return hwp, hbp, owp, obp


# ---------------------------------------------------------------------------
# Forward wrapper
# ---------------------------------------------------------------------------
def neural_net_with_quantile_forward(x, padded_params, *, output_size,
                                     block_batch=512):
    """x: (B, D) unpadded. padded_params: output of prepare_params().
    Returns (B, output_size)."""
    hwp, hbp, owp, obp = padded_params
    B, D = x.shape
    L, Dp, _ = hwp.shape
    Op = owp.shape[1]
    assert L >= 1, "module always has at least one hidden layer"

    # Batch tiling: keep TB large (BW-bound kernel, per-step overhead ~0.35us),
    # but force >= 2 tiles (when possible) so the 'parallel' axis actually
    # splits across the 2 TensorCores on v7x (no-op on single-TC v5e/v6e).
    min_tiles = 2 if B > 8 else 1
    n_tiles = max(min_tiles, pl.cdiv(B, block_batch))
    TB = _round_up(pl.cdiv(B, n_tiles), 8)
    grid = (pl.cdiv(B, TB),)

    # VMEM budget: double-buffered activation/output tiles, single-buffered
    # resident weights, plus rough headroom for in-kernel f32 intermediates.
    act_isz = jnp.dtype(x.dtype).itemsize
    w_isz = jnp.dtype(hwp.dtype).itemsize
    vmem_needed = (2 * TB * D * act_isz
                   + 2 * TB * Op * act_isz
                   + (L * Dp * Dp + L * Dp + Dp * Op + Op) * w_isz
                   + 3 * TB * Dp * 4)
    try:
        info = pltpu.get_tpu_info()
        vmem_cap = int(getattr(info, "vmem_capacity_bytes", 64 << 20))
    except Exception:
        vmem_cap = 64 << 20  # v7x per-TensorCore physical VMEM (smallest gen)
    vmem_limit = min(max(int(vmem_needed * 2), 32 << 20), int(0.8 * vmem_cap))

    def _call(weight_pipeline_mode):
        wkw = ({} if weight_pipeline_mode is None
               else {"pipeline_mode": weight_pipeline_mode})
        return pl.pallas_call(
            _mlp_quantile_kernel,
            out_shape=jax.ShapeDtypeStruct((B, Op), x.dtype),
            grid_spec=pltpu.PrefetchScalarGridSpec(
                num_scalar_prefetch=0,
                grid=grid,
                in_specs=[
                    # Activations: batch-tiled, unpadded feature dim
                    # (== full array dim), double-buffered by default.
                    pl.BlockSpec((TB, D), lambda i: (i, 0)),
                    # Weights/biases: constant index_map -> VMEM-resident;
                    # single-buffer to halve their footprint.
                    pl.BlockSpec((L, Dp, Dp), lambda i: (0, 0, 0), **wkw),
                    pl.BlockSpec((L, 1, Dp), lambda i: (0, 0, 0), **wkw),
                    pl.BlockSpec((Dp, Op), lambda i: (0, 0), **wkw),
                    pl.BlockSpec((1, Op), lambda i: (0, 0), **wkw),
                ],
                out_specs=pl.BlockSpec((TB, Op), lambda i: (i, 0)),
            ),
            compiler_params=pltpu.CompilerParams(
                dimension_semantics=("parallel",),
                vmem_limit_bytes=vmem_limit,
            ),
        )(x, hwp, hbp, owp, obp)

    try:
        out_padded = _call(pl.Buffered(1))
    except Exception:
        # Fallback for Pallas versions rejecting single-buffered block specs.
        out_padded = _call(None)

    return out_padded[:, :output_size]


# ---------------------------------------------------------------------------
# Init & reference
# ---------------------------------------------------------------------------
def init_params(key, input_size, output_size, num_layers):
    """Deterministic init mimicking PyTorch nn.Linear default
    (uniform(-1/sqrt(fan_in), 1/sqrt(fan_in))). Weights stored as (in, out)."""
    keys = jax.random.split(key, 2 * num_layers + 2)
    bound = 1.0 / (input_size ** 0.5)

    hidden_w, hidden_b = [], []
    for i in range(num_layers):
        w = jax.random.uniform(keys[2 * i], (input_size, input_size),
                               jnp.float32, -bound, bound)
        b = jax.random.uniform(keys[2 * i + 1], (1, input_size),
                               jnp.float32, -bound, bound)
        hidden_w.append(w)
        hidden_b.append(b)
    hidden_w = jnp.stack(hidden_w, axis=0)                 # (L, D, D)
    hidden_b = jnp.stack(hidden_b, axis=0)                 # (L, 1, D)

    out_w = jax.random.uniform(keys[-2], (input_size, output_size),
                               jnp.float32, -bound, bound)   # (D, O)
    out_b = jax.random.uniform(keys[-1], (1, output_size),
                               jnp.float32, -bound, bound)   # (1, O)
    return hidden_w, hidden_b, out_w, out_b


def reference_forward(x, hidden_w, hidden_b, out_w, out_b):
    """Pure-JAX reference matching the PyTorch forward exactly."""
    h = x
    for i in range(hidden_w.shape[0]):
        h = jnp.maximum(h @ hidden_w[i] + hidden_b[i], 0.0)
    return h @ out_w + out_b


if __name__ == "__main__":
    # Small shapes consistent with the module (plain MLP on (batch, features));
    # batch large enough that the batch grid has >= 2 tiles.
    batch = 256
    input_size = 32
    output_size = 8
    num_layers = 2

    key = jax.random.PRNGKey(0)
    k_x, k_p = jax.random.split(key)

    x = jax.random.normal(k_x, (batch, input_size), dtype=jnp.float32)
    hidden_w, hidden_b, out_w, out_b = init_params(
        k_p, input_size, output_size, num_layers)

    # One-time (off the hot path) parameter padding.
    padded_params = prepare_params(hidden_w, hidden_b, out_w, out_b)

    out = neural_net_with_quantile_forward(x, padded_params,
                                           output_size=output_size)
    out = jax.block_until_ready(out)

    ref = reference_forward(x, hidden_w, hidden_b, out_w, out_b)
    assert out.shape == (batch, output_size)
    assert jnp.allclose(out, ref, atol=1e-5, rtol=1e-5), "mismatch vs reference"

    print("KERNEL_OK")
</pallas_src>

<mosaic_0001>
module attributes {stable_mosaic.version = 11 : i64} {
  func.func @_mlp_quantile_kernel(%arg0: i32, %arg1: memref<128x32xf32, #tpu.memory_space<vmem>>, %arg2: memref<2x128x128xf32, #tpu.memory_space<vmem>>, %arg3: memref<2x1x128xf32, #tpu.memory_space<vmem>>, %arg4: memref<128x128xf32, #tpu.memory_space<vmem>>, %arg5: memref<1x128xf32, #tpu.memory_space<vmem>>, %arg6: memref<128x128xf32, #tpu.memory_space<vmem>>) attributes {dimension_semantics = [#tpu.dimension_semantics<parallel>], iteration_bounds = array<i64: 2>, scalar_prefetch = 0 : i64, scratch_operands = 0 : i64, tpu.core_type = #tpu.core_type<tc>, window_params = [{transform_indices = @transform_0, window_bounds = array<i64: 128, 32>}, {pipeline_mode = #tpu.pipeline_mode<synchronous>, transform_indices = @transform_1, window_bounds = array<i64: 2, 128, 128>}, {pipeline_mode = #tpu.pipeline_mode<synchronous>, transform_indices = @transform_2, window_bounds = array<i64: 2, 1, 128>}, {pipeline_mode = #tpu.pipeline_mode<synchronous>, transform_indices = @transform_3, window_bounds = array<i64: 128, 128>}, {pipeline_mode = #tpu.pipeline_mode<synchronous>, transform_indices = @transform_4, window_bounds = array<i64: 1, 128>}, {transform_indices = @transform_5, window_bounds = array<i64: 128, 128>}]} {
    %c0 = arith.constant 0 : index
    %c0_0 = arith.constant 0 : index
    %0 = vector.load %arg1[%c0, %c0_0] : memref<128x32xf32, #tpu.memory_space<vmem>>, vector<128x32xf32>
    %c0_1 = arith.constant 0 : index
    %c0_2 = arith.constant 0 : index
    %c0_3 = arith.constant 0 : index
    %1 = vector.load %arg2[%c0_1, %c0_2, %c0_3] : memref<2x128x128xf32, #tpu.memory_space<vmem>>, vector<1x32x128xf32>
    %2 = vector.shape_cast %1 : vector<1x32x128xf32> to vector<32x128xf32>
    %cst = arith.constant dense<0.000000e+00> : vector<128x128xf32>
    %3 = tpu.matmul %0, %2, %cst {dimension_numbers = #tpu.dot_dimension_numbers<[1], [0], [0], [1], [0, 0, 1, 1], [], []>} : vector<128x32xf32>, vector<32x128xf32>, vector<128x128xf32> -> vector<128x128xf32>
    %c0_4 = arith.constant 0 : index
    %c0_5 = arith.constant 0 : index
    %c0_6 = arith.constant 0 : index
    %4 = vector.load %arg3[%c0_4, %c0_5, %c0_6] : memref<2x1x128xf32, #tpu.memory_space<vmem>>, vector<1x1x128xf32>
    %5 = vector.shape_cast %4 : vector<1x1x128xf32> to vector<1x128xf32>
    %6 = vector.broadcast %5 : vector<1x128xf32> to vector<128x128xf32>
    %7 = arith.addf %3, %6 : vector<128x128xf32>
    %cst_7 = arith.constant 0.000000e+00 : f32
    %8 = vector.broadcast %cst_7 : f32 to vector<128x128xf32>
    %9 = arith.maximumf %7, %8 : vector<128x128xf32>
    %c1 = arith.constant 1 : index
    %c0_8 = arith.constant 0 : index
    %c0_9 = arith.constant 0 : index
    %10 = vector.load %arg2[%c1, %c0_8, %c0_9] : memref<2x128x128xf32, #tpu.memory_space<vmem>>, vector<1x128x128xf32>
    %11 = vector.shape_cast %10 : vector<1x128x128xf32> to vector<128x128xf32>
    %cst_10 = arith.constant dense<0.000000e+00> : vector<128x128xf32>
    %12 = tpu.matmul %9, %11, %cst_10 {dimension_numbers = #tpu.dot_dimension_numbers<[1], [0], [0], [1], [0, 0, 1, 1], [], []>} : vector<128x128xf32>, vector<128x128xf32>, vector<128x128xf32> -> vector<128x128xf32>
    %c1_11 = arith.constant 1 : index
    %c0_12 = arith.constant 0 : index
    %c0_13 = arith.constant 0 : index
    %13 = vector.load %arg3[%c1_11, %c0_12, %c0_13] : memref<2x1x128xf32, #tpu.memory_space<vmem>>, vector<1x1x128xf32>
    %14 = vector.shape_cast %13 : vector<1x1x128xf32> to vector<1x128xf32>
    %15 = vector.broadcast %14 : vector<1x128xf32> to vector<128x128xf32>
    %16 = arith.addf %12, %15 : vector<128x128xf32>
    %cst_14 = arith.constant 0.000000e+00 : f32
    %17 = vector.broadcast %cst_14 : f32 to vector<128x128xf32>
    %18 = arith.maximumf %16, %17 : vector<128x128xf32>
    %c0_15 = arith.constant 0 : index
    %c0_16 = arith.constant 0 : index
    %19 = vector.load %arg4[%c0_15, %c0_16] : memref<128x128xf32, #tpu.memory_space<vmem>>, vector<128x128xf32>
    %cst_17 = arith.constant dense<0.000000e+00> : vector<128x128xf32>
    %20 = tpu.matmul %18, %19, %cst_17 {dimension_numbers = #tpu.dot_dimension_numbers<[1], [0], [0], [1], [0, 0, 1, 1], [], []>} : vector<128x128xf32>, vector<128x128xf32>, vector<128x128xf32> -> vector<128x128xf32>
    %c0_18 = arith.constant 0 : index
    %c0_19 = arith.constant 0 : index
    %21 = vector.load %arg5[%c0_18, %c0_19] : memref<1x128xf32, #tpu.memory_space<vmem>>, vector<1x128xf32>
    %22 = vector.broadcast %21 : vector<1x128xf32> to vector<128x128xf32>
    %23 = arith.addf %20, %22 : vector<128x128xf32>
    %c0_20 = arith.constant 0 : index
    %c0_21 = arith.constant 0 : index
    %24 = vector.load %arg6[%c0_20, %c0_21] : memref<128x128xf32, #tpu.memory_space<vmem>>, vector<128x128xf32>
    tpu.vector_store %arg6[%c0_20, %c0_21], %23 {strides = array<i32>} : memref<128x128xf32, #tpu.memory_space<vmem>>, vector<128x128xf32>,
    return
  }
  func.func @transform_0(%arg0: i32) -> (i32, i32) {
    %c0_i32 = arith.constant 0 : i32
    %c0_i32_0 = arith.constant 0 : i32
    return %arg0, %c0_i32 : i32, i32
  }
  func.func @transform_1(%arg0: i32) -> (i32, i32, i32) {
    %c0_i32 = arith.constant 0 : i32
    %c0_i32_0 = arith.constant 0 : i32
    %c0_i32_1 = arith.constant 0 : i32
    %c0_i32_2 = arith.constant 0 : i32
    return %c0_i32, %c0_i32_0, %c0_i32_1 : i32, i32, i32
  }
  func.func @transform_2(%arg0: i32) -> (i32, i32, i32) {
    %c0_i32 = arith.constant 0 : i32
    %c0_i32_0 = arith.constant 0 : i32
    %c0_i32_1 = arith.constant 0 : i32
    %c0_i32_2 = arith.constant 0 : i32
    return %c0_i32, %c0_i32_0, %c0_i32_1 : i32, i32, i32
  }
  func.func @transform_3(%arg0: i32) -> (i32, i32) {
    %c0_i32 = arith.constant 0 : i32
    %c0_i32_0 = arith.constant 0 : i32
    %c0_i32_1 = arith.constant 0 : i32
    return %c0_i32, %c0_i32_0 : i32, i32
  }
  func.func @transform_4(%arg0: i32) -> (i32, i32) {
    %c0_i32 = arith.constant 0 : i32
    %c0_i32_0 = arith.constant 0 : i32
    %c0_i32_1 = arith.constant 0 : i32
    return %c0_i32, %c0_i32_0 : i32, i32
  }
  func.func @transform_5(%arg0: i32) -> (i32, i32) {
    %c0_i32 = arith.constant 0 : i32
    %c0_i32_0 = arith.constant 0 : i32
    return %arg0, %c0_i32 : i32, i32
  }
}

module attributes {stable_mosaic.version = 11 : i64} {
  func.func @_mlp_quantile_kernel(%arg0: i32, %arg1: memref<128x32xf32, #tpu.memory_space<vmem>>, %arg2: memref<2x128x128xf32, #tpu.memory_space<vmem>>, %arg3: memref<2x1x128xf32, #tpu.memory_space<vmem>>, %arg4: memref<128x128xf32, #tpu.memory_space<vmem>>, %arg5: memref<1x128xf32, #tpu.memory_space<vmem>>, %arg6: memref<128x128xf32, #tpu.memory_space<vmem>>) attributes {dimension_semantics = [#tpu.dimension_semantics<parallel>], iteration_bounds = array<i64: 2>, scalar_prefetch = 0 : i64, scratch_operands = 0 : i64, tpu.core_type = #tpu.core_type<tc>, window_params = [{transform_indices = @transform_0, window_bounds = array<i64: 128, 32>}, {pipeline_mode = #tpu.pipeline_mode<synchronous>, transform_indices = @transform_1, window_bounds = array<i64: 2, 128, 128>}, {pipeline_mode = #tpu.pipeline_mode<synchronous>, transform_indices = @transform_2, window_bounds = array<i64: 2, 1, 128>}, {pipeline_mode = #tpu.pipeline_mode<synchronous>, transform_indices = @transform_3, window_bounds = array<i64: 128, 128>}, {pipeline_mode = #tpu.pipeline_mode<synchronous>, transform_indices = @transform_4, window_bounds = array<i64: 1, 128>}, {transform_indices = @transform_5, window_bounds = array<i64: 128, 128>}]} {
    %c0 = arith.constant 0 : index
    %c0_0 = arith.constant 0 : index
    %0 = vector.load %arg1[%c0, %c0_0] : memref<128x32xf32, #tpu.memory_space<vmem>>, vector<128x32xf32>
    %c0_1 = arith.constant 0 : index
    %c0_2 = arith.constant 0 : index
    %c0_3 = arith.constant 0 : index
    %1 = vector.load %arg2[%c0_1, %c0_2, %c0_3] : memref<2x128x128xf32, #tpu.memory_space<vmem>>, vector<1x32x128xf32>
    %2 = vector.shape_cast %1 : vector<1x32x128xf32> to vector<32x128xf32>
    %cst = arith.constant dense<0.000000e+00> : vector<128x128xf32>
    %3 = tpu.matmul %0, %2, %cst {dimension_numbers = #tpu.dot_dimension_numbers<[1], [0], [0], [1], [0, 0, 1, 1], [], []>} : vector<128x32xf32>, vector<32x128xf32>, vector<128x128xf32> -> vector<128x128xf32>
    %c0_4 = arith.constant 0 : index
    %c0_5 = arith.constant 0 : index
    %c0_6 = arith.constant 0 : index
    %4 = vector.load %arg3[%c0_4, %c0_5, %c0_6] : memref<2x1x128xf32, #tpu.memory_space<vmem>>, vector<1x1x128xf32>
    %5 = vector.shape_cast %4 : vector<1x1x128xf32> to vector<1x128xf32>
    %6 = vector.broadcast %5 : vector<1x128xf32> to vector<128x128xf32>
    %7 = arith.addf %3, %6 : vector<128x128xf32>
    %cst_7 = arith.constant 0.000000e+00 : f32
    %8 = vector.broadcast %cst_7 : f32 to vector<128x128xf32>
    %9 = arith.maximumf %7, %8 : vector<128x128xf32>
    %c1 = arith.constant 1 : index
    %c0_8 = arith.constant 0 : index
    %c0_9 = arith.constant 0 : index
    %10 = vector.load %arg2[%c1, %c0_8, %c0_9] : memref<2x128x128xf32, #tpu.memory_space<vmem>>, vector<1x128x128xf32>
    %11 = vector.shape_cast %10 : vector<1x128x128xf32> to vector<128x128xf32>
    %cst_10 = arith.constant dense<0.000000e+00> : vector<128x128xf32>
    %12 = tpu.matmul %9, %11, %cst_10 {dimension_numbers = #tpu.dot_dimension_numbers<[1], [0], [0], [1], [0, 0, 1, 1], [], []>} : vector<128x128xf32>, vector<128x128xf32>, vector<128x128xf32> -> vector<128x128xf32>
    %c1_11 = arith.constant 1 : index
    %c0_12 = arith.constant 0 : index
    %c0_13 = arith.constant 0 : index
    %13 = vector.load %arg3[%c1_11, %c0_12, %c0_13] : memref<2x1x128xf32, #tpu.memory_space<vmem>>, vector<1x1x128xf32>
    %14 = vector.shape_cast %13 : vector<1x1x128xf32> to vector<1x128xf32>
    %15 = vector.broadcast %14 : vector<1x128xf32> to vector<128x128xf32>
    %16 = arith.addf %12, %15 : vector<128x128xf32>
    %cst_14 = arith.constant 0.000000e+00 : f32
    %17 = vector.broadcast %cst_14 : f32 to vector<128x128xf32>
    %18 = arith.maximumf %16, %17 : vector<128x128xf32>
    %c0_15 = arith.constant 0 : index
    %c0_16 = arith.constant 0 : index
    %19 = vector.load %arg4[%c0_15, %c0_16] : memref<128x128xf32, #tpu.memory_space<vmem>>, vector<128x128xf32>
    %cst_17 = arith.constant dense<0.000000e+00> : vector<128x128xf32>
    %20 = tpu.matmul %18, %19, %cst_17 {dimension_numbers = #tpu.dot_dimension_numbers<[1], [0], [0], [1], [0, 0, 1, 1], [], []>} : vector<128x128xf32>, vector<128x128xf32>, vector<128x128xf32> -> vector<128x128xf32>
    %c0_18 = arith.constant 0 : index
    %c0_19 = arith.constant 0 : index
    %21 = vector.load %arg5[%c0_18, %c0_19] : memref<1x128xf32, #tpu.memory_space<vmem>>, vector<1x128xf32>
    %22 = vector.broadcast %21 : vector<1x128xf32> to vector<128x128xf32>
    %23 = arith.addf %20, %22 : vector<128x128xf32>
    %c0_20 = arith.constant 0 : index
    %c0_21 = arith.constant 0 : index
    %24 = vector.load %arg6[%c0_20, %c0_21] : memref<128x128xf32, #tpu.memory_space<vmem>>, vector<128x128xf32>
    tpu.vector_store %arg6[%c0_20, %c0_21], %23 {strides = array<i32>} : memref<128x128xf32, #tpu.memory_space<vmem>>, vector<128x128xf32>,
    return
  }
  func.func @transform_0(%arg0: i32) -> (i32, i32) {
    %c0_i32 = arith.constant 0 : i32
    %c0_i32_0 = arith.constant 0 : i32
    return %arg0, %c0_i32 : i32, i32
  }
  func.func @transform_1(%arg0: i32) -> (i32, i32, i32) {
    %c0_i32 = arith.constant 0 : i32
    %c0_i32_0 = arith.constant 0 : i32
    %c0_i32_1 = arith.constant 0 : i32
    %c0_i32_2 = arith.constant 0 : i32
    return %c0_i32, %c0_i32_0, %c0_i32_1 : i32, i32, i32
  }
  func.func @transform_2(%arg0: i32) -> (i32, i32, i32) {
    %c0_i32 = arith.constant 0 : i32
    %c0_i32_0 = arith.constant 0 : i32
    %c0_i32_1 = arith.constant 0 : i32
    %c0_i32_2 = arith.constant 0 : i32
    return %c0_i32, %c0_i32_0, %c0_i32_1 : i32, i32, i32
  }
  func.func @transform_3(%arg0: i32) -> (i32, i32) {
    %c0_i32 = arith.constant 0 : i32
    %c0_i32_0 = arith.constant 0 : i32
    %c0_i32_1 = arith.constant 0 : i32
    return %c0_i32, %c0_i32_0 : i32, i32
  }
  func.func @transform_4(%arg0: i32) -> (i32, i32) {
    %c0_i32 = arith.constant 0 : i32
    %c0_i32_0 = arith.constant 0 : i32
    %c0_i32_1 = arith.constant 0 : i32
    return %c0_i32, %c0_i32_0 : i32, i32
  }
  func.func @transform_5(%arg0: i32) -> (i32, i32) {
    %c0_i32 = arith.constant 0 : i32
    %c0_i32_0 = arith.constant 0 : i32
    return %arg0, %c0_i32 : i32, i32
  }
}

</mosaic_0001>

<llo_original>
// kernel: tpu_custom_call.1
$region0: #{tpu_custom_call.1}
  #allocation0 [shape = 'u32[]', space=smem, size = 0x4, offset = 0x4, fixed_abs, tag = 'smem constant byte address 0x4 - core index']
  #allocation1 [shape = 'u32[72,128]{1,0:T(1,128)}', space=vmem, size = 0x9000, scoped, tag = 'internal scratch']
  %s0 = inlined_call_operand.vmem [shape: f32[256,32], index: 0, kind: input, shape index: {}]
  %s1 = inlined_call_operand.vmem [shape: f32[2,128,128], index: 1, kind: input, shape index: {}]
  %s2 = inlined_call_operand.vmem [shape: f32[2,1,128], index: 2, kind: input, shape index: {}]
  %s3 = inlined_call_operand.hbm [shape: f32[128,128], index: 3, kind: input, shape index: {}]
  %s4 = inlined_call_operand.vmem [shape: f32[1,128], index: 4, kind: input, shape index: {}]
  %s5 = inlined_call_operand.hbm [shape: f32[256,128], index: 5, kind: output, shape index: {}]
  %s6 = sld [smem:[#allocation0]]
  $region57: #{tpu_custom_call.1} parent=0
    _
  %s8 = ssub.s32 1, %s6
  %s9 = scalar_select 0, %s8, %s6
  $region1: #{tpu_custom_call.1} parent=0
    #allocation2 [shape = 'u8[65536]{0}', space=vmem, size = 0x10000, scoped, tag = 'input window, operand 3, single buffered']
    #allocation3 [shape = 's32[2]{0}', space=sflag, size = 0x8, scoped, tag = 'scoped memory for tpu_custom_call.1']
    #allocation4 [shape = 's32[2]{0}', space=sflag, size = 0x8, scoped, tag = 'scoped memory for tpu_custom_call.1']
    #allocation5 [shape = 'u8[131072]{0}', space=vmem, size = 0x20000, scoped, tag = 'output window, operand 0']
    %10 = vsyncpa [#allocation3], 0
    %11 = vsyncpa [#allocation4], 0
    %s12 = scalar_lea.sflag [#allocation4], 1
    %13 = vsyncpa %s12, 0
    loop: start=0, step=1, limit=4
    $region2: #{tpu_custom_call.1} parent=1 // loop_pre_header
      _
    $region3: #{tpu_custom_call.1} parent=1 // loop_header
      %s15 = sphi 0, %s19
      %p16 = scmp.ge.s32.totalorder %s15, 4
      %s25 = sphi 0, %s27
      %s28 = sphi 0, %s25
      %s29 = sphi 0, %s28
      %s45 = sphi 0, %s29
      %s49 = sphi 0, %s49
      %s51 = sphi 0, %s49
      %s52 = sphi 0, %s51
      %s66 = sphi 0, %s52
      %s70 = sphi 0, %s70
      %s72 = sphi 0, %s70
      %s73 = sphi 0, %s72
      %s87 = sphi 0, %s73
      %s91 = sphi 0, %s91
      %s93 = sphi 0, %s91
      %s94 = sphi 0, %s93
      %s108 = sphi 0, %s94
      %s112 = sphi 0, %s112
      %s114 = sphi 0, %s112
      %s115 = sphi 0, %s114
      %s129 = sphi 0, %s115
      %s135 = sphi 0, %s137
      %s138 = sphi 0, %s135
      %s139 = sphi 0, %s138
      %s155 = sphi 0, %s139
    $region4: #{tpu_custom_call.1} parent=1 // loop_header_branch
      %18 = sbr.rel (%p16) target = $region8
    $region5: #{tpu_custom_call.1} parent=1 // loop_body
      %s20 = ssub.s32 %s15, 1
      %s21 = ssub.s32 %s15, 2
      %s22 = sadd.s32 %s15, 1
      %s23 = ssub.s32 %s15, %s22
      %p24 = scmp.eq.s32.totalorder %s23, 0
      %s26 = sadd.s32 %s25, 1
      %s27 = scalar_select %p24, %s25, %s26
      %p30 = pneg %p24
      %p31 = scmp.eq.s32.totalorder %s15, 1
      %p32 = por %p30, %p31
      %p33 = scmp.ne.s32.totalorder %s25, %s28
      %p34 = scmp.eq.s32.totalorder %s15, 0
      %p35 = por %p33, %p34
      %p36 = scmp.ne.s32.totalorder %s25, %s28
      %p37 = scmp.eq.s32.totalorder %s20, 1
      %p38 = por %p36, %p37
      %p39 = scmp.ne.s32.totalorder %s28, %s29
      %p40 = scmp.eq.s32.totalorder %s20, 0
      %p41 = por %p39, %p40
      %p42 = scmp.ne.s32.totalorder %s28, %s29
      %p43 = scmp.eq.s32.totalorder %s21, 1
      %p44 = por %p42, %p43
      %p46 = scmp.ne.s32.totalorder %s29, %s45
      %p47 = scmp.eq.s32.totalorder %s21, 0
      %p48 = por %p46, %p47
      %s50 = sadd.s32 %s49, 1
      %p53 = scmp.eq.s32.totalorder %s15, 1
      %p54 = scmp.ne.s32.totalorder %s49, %s51
      %p55 = scmp.eq.s32.totalorder %s15, 0
      %p56 = por %p54, %p55
      %p57 = scmp.ne.s32.totalorder %s49, %s51
      %p58 = scmp.eq.s32.totalorder %s20, 1
      %p59 = por %p57, %p58
      %p60 = scmp.ne.s32.totalorder %s51, %s52
      %p61 = scmp.eq.s32.totalorder %s20, 0
      %p62 = por %p60, %p61
      %p63 = scmp.ne.s32.totalorder %s51, %s52
      %p64 = scmp.eq.s32.totalorder %s21, 1
      %p65 = por %p63, %p64
      %p67 = scmp.ne.s32.totalorder %s52, %s66
      %p68 = scmp.eq.s32.totalorder %s21, 0
      %p69 = por %p67, %p68
      %s71 = sadd.s32 %s70, 1
      %p74 = scmp.eq.s32.totalorder %s15, 1
      %p75 = scmp.ne.s32.totalorder %s70, %s72
      %p76 = scmp.eq.s32.totalorder %s15, 0
      %p77 = por %p75, %p76
      %p78 = scmp.ne.s32.totalorder %s70, %s72
      %p79 = scmp.eq.s32.totalorder %s20, 1
      %p80 = por %p78, %p79
      %p81 = scmp.ne.s32.totalorder %s72, %s73
      %p82 = scmp.eq.s32.totalorder %s20, 0
      %p83 = por %p81, %p82
      %p84 = scmp.ne.s32.totalorder %s72, %s73
      %p85 = scmp.eq.s32.totalorder %s21, 1
      %p86 = por %p84, %p85
      %p88 = scmp.ne.s32.totalorder %s73, %s87
      %p89 = scmp.eq.s32.totalorder %s21, 0
      %p90 = por %p88, %p89
      %s92 = sadd.s32 %s91, 1
      %p95 = scmp.eq.s32.totalorder %s15, 1
      %p96 = scmp.ne.s32.totalorder %s91, %s93
      %p97 = scmp.eq.s32.totalorder %s15, 0
      %p98 = por %p96, %p97
      %p99 = scmp.ne.s32.totalorder %s91, %s93
      %p100 = scmp.eq.s32.totalorder %s20, 1
      %p101 = por %p99, %p100
      %p102 = scmp.ne.s32.totalorder %s93, %s94
      %p103 = scmp.eq.s32.totalorder %s20, 0
      %p104 = por %p102, %p103
      %p105 = scmp.ne.s32.totalorder %s93, %s94
      %p106 = scmp.eq.s32.totalorder %s21, 1
      %p107 = por %p105, %p106
      %p109 = scmp.ne.s32.totalorder %s94, %s108
      %p110 = scmp.eq.s32.totalorder %s21, 0
      %p111 = por %p109, %p110
      %s113 = sadd.s32 %s112, 1
      %p116 = scmp.eq.s32.totalorder %s15, 1
      %p117 = scmp.ne.s32.totalorder %s112, %s114
      %p118 = scmp.eq.s32.totalorder %s15, 0
      %p119 = por %p117, %p118
      %p120 = scmp.ne.s32.totalorder %s112, %s114
      %p121 = scmp.eq.s32.totalorder %s20, 1
      %p122 = por %p120, %p121
      %p123 = scmp.ne.s32.totalorder %s114, %s115
      %p124 = scmp.eq.s32.totalorder %s20, 0
      %p125 = por %p123, %p124
      %p126 = scmp.ne.s32.totalorder %s114, %s115
      %p127 = scmp.eq.s32.totalorder %s21, 1
      %p128 = por %p126, %p127
      %p130 = scmp.ne.s32.totalorder %s115, %s129
      %p131 = scmp.eq.s32.totalorder %s21, 0
      %p132 = por %p130, %p131
      %s133 = ssub.s32 %s15, %s22
      %p134 = scmp.eq.s32.totalorder %s133, 0
      %s136 = sadd.s32 %s135, 1
      %s137 = scalar_select %p134, %s135, %s136
      %p140 = pneg %p134
      %p141 = scmp.eq.s32.totalorder %s15, 1
      %p142 = por %p140, %p141
      %p143 = scmp.ne.s32.totalorder %s135, %s138
      %p144 = scmp.eq.s32.totalorder %s15, 0
      %p145 = por %p143, %p144
      %p146 = scmp.ne.s32.totalorder %s135, %s138
      %p147 = scmp.eq.s32.totalorder %s20, 1
      %p148 = por %p146, %p147
      %p149 = scmp.ne.s32.totalorder %s138, %s139
      %p150 = scmp.eq.s32.totalorder %s20, 0
      %p151 = por %p149, %p150
      %p152 = scmp.ne.s32.totalorder %s138, %s139
      %p153 = scmp.eq.s32.totalorder %s21, 1
      %p154 = por %p152, %p153
      %p156 = scmp.ne.s32.totalorder %s139, %s155
      %p157 = scmp.eq.s32.totalorder %s21, 0
      %p158 = por %p156, %p157
      %p159 = scmp.le.s32.totalorder 1, %s15
      %p160 = scmp.lt.s32.totalorder %s15, 3
      %p161 = pnand %p159, %p160
      %p162 = pneg %p161
      // Predicated region
      $region9: #{tpu_custom_call.1} parent=5 // pred_check
        _
      $region10: #{tpu_custom_call.1} parent=5 // pred_check_branch
        %164 = sbr.rel (%p161) target = $region12
      $region11: #{tpu_custom_call.1} parent=5 // pred_region
        %s165 = ssub.s32 %s15, 1
        // Predicated region
        $region13: #{tpu_custom_call.1} parent=11 // pred_check
          %p166 = pneg %p62
        $region14: #{tpu_custom_call.1} parent=11 // pred_check_branch
          %168 = sbr.rel (%p166) target = $region16
        $region15: #{tpu_custom_call.1} parent=11 // pred_region
          _
        $region16: #{tpu_custom_call.1} parent=11 // pred_fallthru
          _
        // Predicated region
        $region17: #{tpu_custom_call.1} parent=11 // pred_check
          %p169 = pneg %p83
        $region18: #{tpu_custom_call.1} parent=11 // pred_check_branch
          %171 = sbr.rel (%p169) target = $region20
        $region19: #{tpu_custom_call.1} parent=11 // pred_region
          _
        $region20: #{tpu_custom_call.1} parent=11 // pred_fallthru
          _
        // Predicated region
        $region21: #{tpu_custom_call.1} parent=11 // pred_check
          %p172 = pneg %p104
        $region22: #{tpu_custom_call.1} parent=11 // pred_check_branch
          %174 = sbr.rel (%p172) target = $region24
        $region23: #{tpu_custom_call.1} parent=11 // pred_region
          %176 = vsyncadd [#allocation3], 0
          %s177 = sshll.u32 %s3, 4
          %s178 = int_to_ptr.hbm [resolvable:$true] %s177
          %s179 = sshll.u32 [#allocation2], 4
          %s180 = int_to_ptr.vmem [resolvable:$true] %s179
          %185 = dma.hbm_to_vmem [thread:$0]  %s178, 2048, %s180, [#allocation3], 128, 128, 8
        $region24: #{tpu_custom_call.1} parent=11 // pred_fallthru
          _
        // Predicated region
        $region25: #{tpu_custom_call.1} parent=11 // pred_check
          %p186 = pneg %p125
        $region26: #{tpu_custom_call.1} parent=11 // pred_check_branch
          %188 = sbr.rel (%p186) target = $region28
        $region27: #{tpu_custom_call.1} parent=11 // pred_region
          _
        $region28: #{tpu_custom_call.1} parent=11 // pred_fallthru
          _
      $region12: #{tpu_custom_call.1} parent=5 // pred_fallthru
        _
      %p189 = scmp.lt.s32.totalorder %s15, 2
      // Predicated region
      $region29: #{tpu_custom_call.1} parent=5 // pred_check
        %p190 = pneg %p189
      $region30: #{tpu_custom_call.1} parent=5 // pred_check_branch
        %192 = sbr.rel (%p190) target = $region32
      $region31: #{tpu_custom_call.1} parent=5 // pred_region
        // Predicated region
        $region33: #{tpu_custom_call.1} parent=31 // pred_check
          %p193 = pneg %p35
        $region34: #{tpu_custom_call.1} parent=31 // pred_check_branch
          %195 = sbr.rel (%p193) target = $region36
        $region35: #{tpu_custom_call.1} parent=31 // pred_region
          %s196 = smul.u32 16, %s15
          %p197 = scmp.lt.s32.totalorder %s196, 31
          %s198 = scalar_select %p197, %s196, 31
          %s199 = smul.addr %s198, 8
          %s200 = scalar_lea.vmem %s0, %s199
          %s201 = smul.u32 16, %s15
        $region36: #{tpu_custom_call.1} parent=31 // pred_fallthru
          _
      $region32: #{tpu_custom_call.1} parent=5 // pred_fallthru
        _
      %p202 = scmp.le.s32.totalorder 1, %s15
      %p203 = scmp.lt.s32.totalorder %s15, 3
      %p204 = pnand %p202, %p203
      %p205 = pneg %p204
      // Predicated region
      $region37: #{tpu_custom_call.1} parent=5 // pred_check
        _
      $region38: #{tpu_custom_call.1} parent=5 // pred_check_branch
        %207 = sbr.rel (%p204) target = $region40
      $region39: #{tpu_custom_call.1} parent=5 // pred_region
        %s208 = ssub.s32 %s15, 1
        // Predicated region
        $region41: #{tpu_custom_call.1} parent=39 // pred_check
          %p209 = pneg %p104
        $region42: #{tpu_custom_call.1} parent=39 // pred_check_branch
          %211 = sbr.rel (%p209) target = $region44
        $region43: #{tpu_custom_call.1} parent=39 // pred_region
          %213 = dma.done [#allocation3], 2048
        $region44: #{tpu_custom_call.1} parent=39 // pred_fallthru
          _
        %s214 = smul.u32 16, %s20
        %p215 = scmp.lt.s32.totalorder %s214, 31
        %s216 = scalar_select %p215, %s214, 31
        %s217 = smul.addr %s216, 8
        %s218 = scalar_lea.vmem %s0, %s217
        %p219 = pneg %p41
        %p220 = pneg %p38
        %p221 = pneg %p62
        %p222 = pneg %p59
        %p223 = pneg %p83
        %p224 = pneg %p80
        %p225 = pneg %p104
        %p226 = pneg %p101
        %p227 = pneg %p125
        %p228 = pneg %p122
        %p229 = pneg %p151
        %p230 = pneg %p148
        %s231 = sand.u32 %s138, 1
        %s232 = scalar_lea.sflag [#allocation4], %s231
        %s233 = sand.u32 %s138, 1
        %s234 = smul.addr %s233, 128
        %s235 = scalar_lea.vmem [#allocation5], %s234
        %s236 = smul.u32 16, %s20
        %p237 = scmp.lt.s32.totalorder %s236, 31
        %s238 = scalar_select %p237, %s236, 31
        %s239 = smul.addr %s238, 8
        %s240 = scalar_lea.vmem %s0, %s239
        %s241 = smul.u32 16, %s20
        %s242 = smul.u32 16, %s20
        %v243 = vld [vmem:[%s240] sm:$0xff]
        %v244 = vld [vmem:[%s240 + $0x8] sm:$0xff]
        %v245 = vld [vmem:[%s240 + $0x10] sm:$0xff]
        %v246 = vld [vmem:[%s240 + $0x18] sm:$0xff]
        %v247 = vld [vmem:[%s240 + $0x20] sm:$0xff]
        %v248 = vld [vmem:[%s240 + $0x28] sm:$0xff]
        %v249 = vld [vmem:[%s240 + $0x30] sm:$0xff]
        %v250 = vld [vmem:[%s240 + $0x38] sm:$0xff]
        %v251 = vld [vmem:[%s240 + $0x40] sm:$0xff]
        %v252 = vld [vmem:[%s240 + $0x48] sm:$0xff]
        %v253 = vld [vmem:[%s240 + $0x50] sm:$0xff]
        %v254 = vld [vmem:[%s240 + $0x58] sm:$0xff]
        %v255 = vld [vmem:[%s240 + $0x60] sm:$0xff]
        %v256 = vld [vmem:[%s240 + $0x68] sm:$0xff]
        %v257 = vld [vmem:[%s240 + $0x70] sm:$0xff]
        %v258 = vld [vmem:[%s240 + $0x78] sm:$0xff]
        %v259 = vld [vmem:[%s1] sm:$0xff]
        %v260 = vld [vmem:[%s1 + $0x8] sm:$0xff]
        %v261 = vld [vmem:[%s1 + $0x10] sm:$0xff]
        %v262 = vld [vmem:[%s1 + $0x18] sm:$0xff]
        %v263 = vld [vmem:[%s2] sm:$0x1]
        %v265 = vperm.slane %v263, 0
        %vm267 = vcmask 261120
        %v269 = vsel %vm267, %v243, 0
        %v272 = vsel %vm267, %v244, 0
        %v275 = vsel %vm267, %v245, 0
        %v278 = vsel %vm267, %v246, 0
        %v281 = vsel %vm267, %v247, 0
        %v284 = vsel %vm267, %v248, 0
        %v287 = vsel %vm267, %v249, 0
        %v290 = vsel %vm267, %v250, 0
        %v293 = vsel %vm267, %v251, 0
        %v296 = vsel %vm267, %v252, 0
        %v299 = vsel %vm267, %v253, 0
        %v302 = vsel %vm267, %v254, 0
        %v305 = vsel %vm267, %v255, 0
        %v308 = vsel %vm267, %v256, 0
        %v311 = vsel %vm267, %v257, 0
        %v314 = vsel %vm267, %v258, 0
        %316 = vmatpush.msra.mxu0 0.0
        %317 = vmatpush.msra.mxu0 0.0
        %318 = vmatpush.msra.mxu0 0.0
        %319 = vmatpush.msra.mxu0 0.0
        %320 = vmatpush.msra.mxu0 0.0
        %321 = vmatpush.msra.mxu0 0.0
        %322 = vmatpush.msra.mxu0 0.0
        %323 = vmatpush.msra.mxu0 0.0
        %324 = vmatpush.msra.mxu0 0.0
        %325 = vmatpush.msra.mxu0 0.0
        %326 = vmatpush.msra.mxu0 0.0
        %327 = vmatpush.msra.mxu0 0.0
        %328 = vmatpush.msra.mxu0 %v262
        %329 = vmatpush.msra.mxu0 %v261
        %330 = vmatpush.msra.mxu0 %v260
        %331 = vmatpush.msra.mxu0 %v259
        %332 = vmatmul.f32.gmra.mxu0 %v269
        %v333 = vpop.f32.mrf.mxu0
        %v334 = vadd.f32 %v265, %v333
        %335 = vmatmul.f32.gmra.mxu0 %v272
        %v336 = vpop.f32.mrf.mxu0
        %v337 = vadd.f32 %v265, %v336
        %338 = vmatmul.f32.gmra.mxu0 %v275
        %v339 = vpop.f32.mrf.mxu0
        %v340 = vadd.f32 %v265, %v339
        %341 = vmatmul.f32.gmra.mxu0 %v278
        %v342 = vpop.f32.mrf.mxu0
        %v343 = vadd.f32 %v265, %v342
        %344 = vmatmul.f32.gmra.mxu0 %v281
        %v345 = vpop.f32.mrf.mxu0
        %v346 = vadd.f32 %v265, %v345
        %347 = vmatmul.f32.gmra.mxu0 %v284
        %v348 = vpop.f32.mrf.mxu0
        %v349 = vadd.f32 %v265, %v348
        %350 = vmatmul.f32.gmra.mxu0 %v287
        %v351 = vpop.f32.mrf.mxu0
        %v352 = vadd.f32 %v265, %v351
        %353 = vmatmul.f32.gmra.mxu0 %v290
        %v354 = vpop.f32.mrf.mxu0
        %v355 = vadd.f32 %v265, %v354
        %356 = vmatmul.f32.gmra.mxu0 %v293
        %v357 = vpop.f32.mrf.mxu0
        %v358 = vadd.f32 %v265, %v357
        %359 = vmatmul.f32.gmra.mxu0 %v296
        %v360 = vpop.f32.mrf.mxu0
        %v361 = vadd.f32 %v265, %v360
        %362 = vmatmul.f32.gmra.mxu0 %v299
        %v363 = vpop.f32.mrf.mxu0
        %v364 = vadd.f32 %v265, %v363
        %365 = vmatmul.f32.gmra.mxu0 %v302
        %v366 = vpop.f32.mrf.mxu0
        %v367 = vadd.f32 %v265, %v366
        %368 = vmatmul.f32.gmra.mxu0 %v305
        %v369 = vpop.f32.mrf.mxu0
        %v370 = vadd.f32 %v265, %v369
        %371 = vmatmul.f32.gmra.mxu0 %v308
        %v372 = vpop.f32.mrf.mxu0
        %v373 = vadd.f32 %v265, %v372
        %374 = vmatmul.f32.gmra.mxu0 %v311
        %v375 = vpop.f32.mrf.mxu0
        %v376 = vadd.f32 %v265, %v375
        %377 = vmatmul.f32.gmra.mxu0 %v314
        %v378 = vpop.f32.mrf.mxu0
        %v379 = vadd.f32 %v265, %v378
        %380 = vdwg.mxu0
        %v381 = vmax.f32 %v334, 0.0
        %v382 = vmax.f32 %v337, 0.0
        %v383 = vmax.f32 %v340, 0.0
        %v384 = vmax.f32 %v343, 0.0
        %v385 = vmax.f32 %v346, 0.0
        %v386 = vmax.f32 %v349, 0.0
        %v387 = vmax.f32 %v352, 0.0
        %v388 = vmax.f32 %v355, 0.0
        %v389 = vmax.f32 %v358, 0.0
        %v390 = vmax.f32 %v361, 0.0
        %v391 = vmax.f32 %v364, 0.0
        %v392 = vmax.f32 %v367, 0.0
        %v393 = vmax.f32 %v370, 0.0
        %v394 = vmax.f32 %v373, 0.0
        %v395 = vmax.f32 %v376, 0.0
        %v396 = vmax.f32 %v379, 0.0
        %s397 = scalar_lea.vmem %s1, 128
        %v398 = vld [vmem:[%s397] sm:$0xff]
        %v399 = vld [vmem:[%s397 + $0x8] sm:$0xff]
        %v400 = vld [vmem:[%s397 + $0x10] sm:$0xff]
        %v401 = vld [vmem:[%s397 + $0x18] sm:$0xff]
        %v402 = vld [vmem:[%s397 + $0x20] sm:$0xff]
        %v403 = vld [vmem:[%s397 + $0x28] sm:$0xff]
        %v404 = vld [vmem:[%s397 + $0x30] sm:$0xff]
        %v405 = vld [vmem:[%s397 + $0x38] sm:$0xff]
        %v406 = vld [vmem:[%s397 + $0x40] sm:$0xff]
        %v407 = vld [vmem:[%s397 + $0x48] sm:$0xff]
        %v408 = vld [vmem:[%s397 + $0x50] sm:$0xff]
        %v409 = vld [vmem:[%s397 + $0x58] sm:$0xff]
        %v410 = vld [vmem:[%s397 + $0x60] sm:$0xff]
        %v411 = vld [vmem:[%s397 + $0x68] sm:$0xff]
        %v412 = vld [vmem:[%s397 + $0x70] sm:$0xff]
        %v413 = vld [vmem:[%s397 + $0x78] sm:$0xff]
        %s414 = scalar_lea.vmem %s2, 1
        %v415 = vld [vmem:[%s414] sm:$0x1]
        %v417 = vperm.slane %v415, 0
        %419 = vmatpush.msra.mxu0 %v413
        %420 = vmatpush.msra.mxu0 %v412
        %421 = vmatpush.msra.mxu0 %v411
        %422 = vmatpush.msra.mxu0 %v410
        %423 = vmatpush.msra.mxu0 %v409
        %424 = vmatpush.msra.mxu0 %v408
        %425 = vmatpush.msra.mxu0 %v407
        %426 = vmatpush.msra.mxu0 %v406
        %427 = vmatpush.msra.mxu0 %v405
        %428 = vmatpush.msra.mxu0 %v404
        %429 = vmatpush.msra.mxu0 %v403
        %430 = vmatpush.msra.mxu0 %v402
        %431 = vmatpush.msra.mxu0 %v401
        %432 = vmatpush.msra.mxu0 %v400
        %433 = vmatpush.msra.mxu0 %v399
        %434 = vmatpush.msra.mxu0 %v398
        %435 = vmatmul.f32.gmra.mxu0 %v381
        %v436 = vpop.f32.mrf.mxu0
        %v437 = vadd.f32 %v417, %v436
        %438 = vmatmul.f32.gmra.mxu0 %v382
        %v439 = vpop.f32.mrf.mxu0
        %v440 = vadd.f32 %v417, %v439
        %441 = vmatmul.f32.gmra.mxu0 %v383
        %v442 = vpop.f32.mrf.mxu0
        %v443 = vadd.f32 %v417, %v442
        %444 = vmatmul.f32.gmra.mxu0 %v384
        %v445 = vpop.f32.mrf.mxu0
        %v446 = vadd.f32 %v417, %v445
        %447 = vmatmul.f32.gmra.mxu0 %v385
        %v448 = vpop.f32.mrf.mxu0
        %v449 = vadd.f32 %v417, %v448
        %450 = vmatmul.f32.gmra.mxu0 %v386
        %v451 = vpop.f32.mrf.mxu0
        %v452 = vadd.f32 %v417, %v451
        %453 = vmatmul.f32.gmra.mxu0 %v387
        %v454 = vpop.f32.mrf.mxu0
        %v455 = vadd.f32 %v417, %v454
        %456 = vmatmul.f32.gmra.mxu0 %v388
        %v457 = vpop.f32.mrf.mxu0
        %v458 = vadd.f32 %v417, %v457
        %459 = vmatmul.f32.gmra.mxu0 %v389
        %v460 = vpop.f32.mrf.mxu0
        %v461 = vadd.f32 %v417, %v460
        %462 = vmatmul.f32.gmra.mxu0 %v390
        %v463 = vpop.f32.mrf.mxu0
        %v464 = vadd.f32 %v417, %v463
        %465 = vmatmul.f32.gmra.mxu0 %v391
        %v466 = vpop.f32.mrf.mxu0
        %v467 = vadd.f32 %v417, %v466
        %468 = vmatmul.f32.gmra.mxu0 %v392
        %v469 = vpop.f32.mrf.mxu0
        %v470 = vadd.f32 %v417, %v469
        %471 = vmatmul.f32.gmra.mxu0 %v393
        %v472 = vpop.f32.mrf.mxu0
        %v473 = vadd.f32 %v417, %v472
        %474 = vmatmul.f32.gmra.mxu0 %v394
        %v475 = vpop.f32.mrf.mxu0
        %v476 = vadd.f32 %v417, %v475
        %477 = vmatmul.f32.gmra.mxu0 %v395
        %v478 = vpop.f32.mrf.mxu0
        %v479 = vadd.f32 %v417, %v478
        %480 = vmatmul.f32.gmra.mxu0 %v396
        %v481 = vpop.f32.mrf.mxu0
        %v482 = vadd.f32 %v417, %v481
        %483 = vdwg.mxu0
        %v484 = vmax.f32 %v437, 0.0
        %v485 = vmax.f32 %v440, 0.0
        %v486 = vmax.f32 %v443, 0.0
        %v487 = vmax.f32 %v446, 0.0
        %v488 = vmax.f32 %v449, 0.0
        %v489 = vmax.f32 %v452, 0.0
        %v490 = vmax.f32 %v455, 0.0
        %v491 = vmax.f32 %v458, 0.0
        %v492 = vmax.f32 %v461, 0.0
        %v493 = vmax.f32 %v464, 0.0
        %v494 = vmax.f32 %v467, 0.0
        %v495 = vmax.f32 %v470, 0.0
        %v496 = vmax.f32 %v473, 0.0
        %v497 = vmax.f32 %v476, 0.0
        %v498 = vmax.f32 %v479, 0.0
        %v499 = vmax.f32 %v482, 0.0
        %v500 = vld [vmem:[#allocation2] sm:$0xff]
        %v501 = vld [vmem:[#allocation2 + $0x8] sm:$0xff]
        %v502 = vld [vmem:[#allocation2 + $0x10] sm:$0xff]
        %v503 = vld [vmem:[#allocation2 + $0x18] sm:$0xff]
        %v504 = vld [vmem:[#allocation2 + $0x20] sm:$0xff]
        %v505 = vld [vmem:[#allocation2 + $0x28] sm:$0xff]
        %v506 = vld [vmem:[#allocation2 + $0x30] sm:$0xff]
        %v507 = vld [vmem:[#allocation2 + $0x38] sm:$0xff]
        %v508 = vld [vmem:[#allocation2 + $0x40] sm:$0xff]
        %v509 = vld [vmem:[#allocation2 + $0x48] sm:$0xff]
        %v510 = vld [vmem:[#allocation2 + $0x50] sm:$0xff]
        %v511 = vld [vmem:[#allocation2 + $0x58] sm:$0xff]
        %v512 = vld [vmem:[#allocation2 + $0x60] sm:$0xff]
        %v513 = vld [vmem:[#allocation2 + $0x68] sm:$0xff]
        %v514 = vld [vmem:[#allocation2 + $0x70] sm:$0xff]
        %v515 = vld [vmem:[#allocation2 + $0x78] sm:$0xff]
        %v516 = vld [vmem:[%s4] sm:$0x1]
        %v518 = vperm.slane %v516, 0
        %520 = vmatpush.msra.mxu0 %v515
        %521 = vmatpush.msra.mxu0 %v514
        %522 = vmatpush.msra.mxu0 %v513
        %523 = vmatpush.msra.mxu0 %v512
        %524 = vmatpush.msra.mxu0 %v511
        %525 = vmatpush.msra.mxu0 %v510
        %526 = vmatpush.msra.mxu0 %v509
        %527 = vmatpush.msra.mxu0 %v508
        %528 = vmatpush.msra.mxu0 %v507
        %529 = vmatpush.msra.mxu0 %v506
        %530 = vmatpush.msra.mxu0 %v505
        %531 = vmatpush.msra.mxu0 %v504
        %532 = vmatpush.msra.mxu0 %v503
        %533 = vmatpush.msra.mxu0 %v502
        %534 = vmatpush.msra.mxu0 %v501
        %535 = vmatpush.msra.mxu0 %v500
        %536 = vmatmul.f32.gmra.mxu0 %v484
        %v537 = vpop.f32.mrf.mxu0
        %v538 = vadd.f32 %v518, %v537
        %539 = vmatmul.f32.gmra.mxu0 %v485
        %v540 = vpop.f32.mrf.mxu0
        %v541 = vadd.f32 %v518, %v540
        %542 = vmatmul.f32.gmra.mxu0 %v486
        %v543 = vpop.f32.mrf.mxu0
        %v544 = vadd.f32 %v518, %v543
        %545 = vmatmul.f32.gmra.mxu0 %v487
        %v546 = vpop.f32.mrf.mxu0
        %v547 = vadd.f32 %v518, %v546
        %548 = vmatmul.f32.gmra.mxu0 %v488
        %v549 = vpop.f32.mrf.mxu0
        %v550 = vadd.f32 %v518, %v549
        %551 = vmatmul.f32.gmra.mxu0 %v489
        %v552 = vpop.f32.mrf.mxu0
        %v553 = vadd.f32 %v518, %v552
        %554 = vmatmul.f32.gmra.mxu0 %v490
        %v555 = vpop.f32.mrf.mxu0
        %v556 = vadd.f32 %v518, %v555
        %557 = vmatmul.f32.gmra.mxu0 %v491
        %v558 = vpop.f32.mrf.mxu0
        %v559 = vadd.f32 %v518, %v558
        %560 = vmatmul.f32.gmra.mxu0 %v492
        %v561 = vpop.f32.mrf.mxu0
        %v562 = vadd.f32 %v518, %v561
        %563 = vmatmul.f32.gmra.mxu0 %v493
        %v564 = vpop.f32.mrf.mxu0
        %v565 = vadd.f32 %v518, %v564
        %566 = vmatmul.f32.gmra.mxu0 %v494
        %v567 = vpop.f32.mrf.mxu0
        %v568 = vadd.f32 %v518, %v567
        %569 = vmatmul.f32.gmra.mxu0 %v495
        %v570 = vpop.f32.mrf.mxu0
        %v571 = vadd.f32 %v518, %v570
        %572 = vmatmul.f32.gmra.mxu0 %v496
        %v573 = vpop.f32.mrf.mxu0
        %v574 = vadd.f32 %v518, %v573
        %575 = vmatmul.f32.gmra.mxu0 %v497
        %v576 = vpop.f32.mrf.mxu0
        %v577 = vadd.f32 %v518, %v576
        %578 = vmatmul.f32.gmra.mxu0 %v498
        %v579 = vpop.f32.mrf.mxu0
        %v580 = vadd.f32 %v518, %v579
        %581 = vmatmul.f32.gmra.mxu0 %v499
        %v582 = vpop.f32.mrf.mxu0
        %v583 = vadd.f32 %v518, %v582
        %584 = vdwg.mxu0
        %585 = vst [vmem:[%s235] sm:$0xff] %v538
        %586 = vst [vmem:[%s235 + $0x8] sm:$0xff] %v541
        %587 = vst [vmem:[%s235 + $0x10] sm:$0xff] %v544
        %588 = vst [vmem:[%s235 + $0x18] sm:$0xff] %v547
        %589 = vst [vmem:[%s235 + $0x20] sm:$0xff] %v550
        %590 = vst [vmem:[%s235 + $0x28] sm:$0xff] %v553
        %591 = vst [vmem:[%s235 + $0x30] sm:$0xff] %v556
        %592 = vst [vmem:[%s235 + $0x38] sm:$0xff] %v559
        %593 = vst [vmem:[%s235 + $0x40] sm:$0xff] %v562
        %594 = vst [vmem:[%s235 + $0x48] sm:$0xff] %v565
        %595 = vst [vmem:[%s235 + $0x50] sm:$0xff] %v568
        %596 = vst [vmem:[%s235 + $0x58] sm:$0xff] %v571
        %597 = vst [vmem:[%s235 + $0x60] sm:$0xff] %v574
        %598 = vst [vmem:[%s235 + $0x68] sm:$0xff] %v577
        %599 = vst [vmem:[%s235 + $0x70] sm:$0xff] %v580
        %600 = vst [vmem:[%s235 + $0x78] sm:$0xff] %v583
        %s601 = sand.u32 %s138, 1
        %s602 = scalar_lea.sflag [#allocation4], %s601
        %s603 = sand.u32 %s138, 1
        %s604 = smul.addr %s603, 128
        %s605 = scalar_lea.vmem [#allocation5], %s604
        // Predicated region
        $region45: #{tpu_custom_call.1} parent=39 // pred_check
          %p606 = pneg %p148
        $region46: #{tpu_custom_call.1} parent=39 // pred_check_branch
          %608 = sbr.rel (%p606) target = $region48
        $region47: #{tpu_custom_call.1} parent=39 // pred_region
          %s609 = smul.u32 16, %s20
          %611 = vsyncadd %s602, 0
          %s612 = smul.addr %s609, 8
          %s613 = scalar_lea.hbm %s5, %s612
          %s614 = sshll.u32 %s605, 4
          %s615 = int_to_ptr.vmem [resolvable:$true] %s614
          %s616 = sshll.u32 %s613, 4
          %s617 = int_to_ptr.hbm [resolvable:$true] %s616
          %622 = dma.vmem_to_hbm [thread:$0]  %s615, 2048, %s617, %s602, 128, 128, 8
        $region48: #{tpu_custom_call.1} parent=39 // pred_fallthru
          _
      $region40: #{tpu_custom_call.1} parent=5 // pred_fallthru
        _
      %p623 = scmp.le.s32.totalorder 2, %s15
      // Predicated region
      $region49: #{tpu_custom_call.1} parent=5 // pred_check
        %p624 = pneg %p623
      $region50: #{tpu_custom_call.1} parent=5 // pred_check_branch
        %626 = sbr.rel (%p624) target = $region52
      $region51: #{tpu_custom_call.1} parent=5 // pred_region
        %s627 = ssub.s32 %s15, 2
        // Predicated region
        $region53: #{tpu_custom_call.1} parent=51 // pred_check
          %p628 = pneg %p154
        $region54: #{tpu_custom_call.1} parent=51 // pred_check_branch
          %630 = sbr.rel (%p628) target = $region56
        $region55: #{tpu_custom_call.1} parent=51 // pred_region
          %s631 = sand.u32 %s139, 1
          %s632 = scalar_lea.sflag [#allocation4], %s631
          %s633 = sand.u32 %s139, 1
          %s634 = smul.addr %s633, 128
          %s635 = scalar_lea.vmem [#allocation5], %s634
          %637 = dma.done %s632, 2048
        $region56: #{tpu_custom_call.1} parent=51 // pred_fallthru
          _
      $region52: #{tpu_custom_call.1} parent=5 // pred_fallthru
        _
    $region6: #{tpu_custom_call.1} parent=1 // loop_footer
      %s19 = sadd.s32 1, %s15
    $region7: #{tpu_custom_call.1} parent=1 // loop_footer_branch
      %14 = sbr.rel target = $region3
    $region8: #{tpu_custom_call.1} parent=1 // loop_exit
      _
    %638 = vsyncpa [#allocation3], 1
    %s639 = scalar_lea.sflag [#allocation3], 1
    %640 = vsyncpa %s639, 1
    %641 = vsyncpa [#allocation4], 1
    %s642 = scalar_lea.sflag [#allocation4], 1
    %643 = vsyncpa %s642, 1

// kernel: tpu_custom_call.1
$region0: #{tpu_custom_call.1}
  #allocation0 [shape = 'u32[]', space=smem, size = 0x4, offset = 0x4, fixed_abs, tag = 'smem constant byte address 0x4 - core index']
  #allocation1 [shape = 'u32[72,128]{1,0:T(1,128)}', space=vmem, size = 0x9000, scoped, tag = 'internal scratch']
  %s0 = inlined_call_operand.vmem [shape: f32[256,32], index: 0, kind: input, shape index: {}]
  %s1 = inlined_call_operand.vmem [shape: f32[2,128,128], index: 1, kind: input, shape index: {}]
  %s2 = inlined_call_operand.vmem [shape: f32[2,1,128], index: 2, kind: input, shape index: {}]
  %s3 = inlined_call_operand.hbm [shape: f32[128,128], index: 3, kind: input, shape index: {}]
  %s4 = inlined_call_operand.vmem [shape: f32[1,128], index: 4, kind: input, shape index: {}]
  %s5 = inlined_call_operand.hbm [shape: f32[256,128], index: 5, kind: output, shape index: {}]
  %s6 = sld [smem:[#allocation0]]
  $region57: #{tpu_custom_call.1} parent=0
    _
  %s8 = ssub.s32 1, %s6
  %s9 = scalar_select 0, %s8, %s6
  $region1: #{tpu_custom_call.1} parent=0
    #allocation2 [shape = 'u8[65536]{0}', space=vmem, size = 0x10000, scoped, tag = 'input window, operand 3, single buffered']
    #allocation3 [shape = 's32[2]{0}', space=sflag, size = 0x8, scoped, tag = 'scoped memory for tpu_custom_call.1']
    #allocation4 [shape = 's32[2]{0}', space=sflag, size = 0x8, scoped, tag = 'scoped memory for tpu_custom_call.1']
    #allocation5 [shape = 'u8[131072]{0}', space=vmem, size = 0x20000, scoped, tag = 'output window, operand 0']
    %10 = vsyncpa [#allocation3], 0
    %11 = vsyncpa [#allocation4], 0
    %s12 = scalar_lea.sflag [#allocation4], 1
    %13 = vsyncpa %s12, 0
    loop: start=0, step=1, limit=4
    $region2: #{tpu_custom_call.1} parent=1 // loop_pre_header
      _
    $region3: #{tpu_custom_call.1} parent=1 // loop_header
      %s15 = sphi 0, %s19
      %p16 = scmp.ge.s32.totalorder %s15, 4
      %s25 = sphi 0, %s27
      %s28 = sphi 0, %s25
      %s29 = sphi 0, %s28
      %s45 = sphi 0, %s29
      %s49 = sphi 0, %s49
      %s51 = sphi 0, %s49
      %s52 = sphi 0, %s51
      %s66 = sphi 0, %s52
      %s70 = sphi 0, %s70
      %s72 = sphi 0, %s70
      %s73 = sphi 0, %s72
      %s87 = sphi 0, %s73
      %s91 = sphi 0, %s91
      %s93 = sphi 0, %s91
      %s94 = sphi 0, %s93
      %s108 = sphi 0, %s94
      %s112 = sphi 0, %s112
      %s114 = sphi 0, %s112
      %s115 = sphi 0, %s114
      %s129 = sphi 0, %s115
      %s135 = sphi 0, %s137
      %s138 = sphi 0, %s135
      %s139 = sphi 0, %s138
      %s155 = sphi 0, %s139
    $region4: #{tpu_custom_call.1} parent=1 // loop_header_branch
      %18 = sbr.rel (%p16) target = $region8
    $region5: #{tpu_custom_call.1} parent=1 // loop_body
      %s20 = ssub.s32 %s15, 1
      %s21 = ssub.s32 %s15, 2
      %s22 = sadd.s32 %s15, 1
      %s23 = ssub.s32 %s15, %s22
      %p24 = scmp.eq.s32.totalorder %s23, 0
      %s26 = sadd.s32 %s25, 1
      %s27 = scalar_select %p24, %s25, %s26
      %p30 = pneg %p24
      %p31 = scmp.eq.s32.totalorder %s15, 1
      %p32 = por %p30, %p31
      %p33 = scmp.ne.s32.totalorder %s25, %s28
      %p34 = scmp.eq.s32.totalorder %s15, 0
      %p35 = por %p33, %p34
      %p36 = scmp.ne.s32.totalorder %s25, %s28
      %p37 = scmp.eq.s32.totalorder %s20, 1
      %p38 = por %p36, %p37
      %p39 = scmp.ne.s32.totalorder %s28, %s29
      %p40 = scmp.eq.s32.totalorder %s20, 0
      %p41 = por %p39, %p40
      %p42 = scmp.ne.s32.totalorder %s28, %s29
      %p43 = scmp.eq.s32.totalorder %s21, 1
      %p44 = por %p42, %p43
      %p46 = scmp.ne.s32.totalorder %s29, %s45
      %p47 = scmp.eq.s32.totalorder %s21, 0
      %p48 = por %p46, %p47
      %s50 = sadd.s32 %s49, 1
      %p53 = scmp.eq.s32.totalorder %s15, 1
      %p54 = scmp.ne.s32.totalorder %s49, %s51
      %p55 = scmp.eq.s32.totalorder %s15, 0
      %p56 = por %p54, %p55
      %p57 = scmp.ne.s32.totalorder %s49, %s51
      %p58 = scmp.eq.s32.totalorder %s20, 1
      %p59 = por %p57, %p58
      %p60 = scmp.ne.s32.totalorder %s51, %s52
      %p61 = scmp.eq.s32.totalorder %s20, 0
      %p62 = por %p60, %p61
      %p63 = scmp.ne.s32.totalorder %s51, %s52
      %p64 = scmp.eq.s32.totalorder %s21, 1
      %p65 = por %p63, %p64
      %p67 = scmp.ne.s32.totalorder %s52, %s66
      %p68 = scmp.eq.s32.totalorder %s21, 0
      %p69 = por %p67, %p68
      %s71 = sadd.s32 %s70, 1
      %p74 = scmp.eq.s32.totalorder %s15, 1
      %p75 = scmp.ne.s32.totalorder %s70, %s72
      %p76 = scmp.eq.s32.totalorder %s15, 0
      %p77 = por %p75, %p76
      %p78 = scmp.ne.s32.totalorder %s70, %s72
      %p79 = scmp.eq.s32.totalorder %s20, 1
      %p80 = por %p78, %p79
      %p81 = scmp.ne.s32.totalorder %s72, %s73
      %p82 = scmp.eq.s32.totalorder %s20, 0
      %p83 = por %p81, %p82
      %p84 = scmp.ne.s32.totalorder %s72, %s73
      %p85 = scmp.eq.s32.totalorder %s21, 1
      %p86 = por %p84, %p85
      %p88 = scmp.ne.s32.totalorder %s73, %s87
      %p89 = scmp.eq.s32.totalorder %s21, 0
      %p90 = por %p88, %p89
      %s92 = sadd.s32 %s91, 1
      %p95 = scmp.eq.s32.totalorder %s15, 1
      %p96 = scmp.ne.s32.totalorder %s91, %s93
      %p97 = scmp.eq.s32.totalorder %s15, 0
      %p98 = por %p96, %p97
      %p99 = scmp.ne.s32.totalorder %s91, %s93
      %p100 = scmp.eq.s32.totalorder %s20, 1
      %p101 = por %p99, %p100
      %p102 = scmp.ne.s32.totalorder %s93, %s94
      %p103 = scmp.eq.s32.totalorder %s20, 0
      %p104 = por %p102, %p103
      %p105 = scmp.ne.s32.totalorder %s93, %s94
      %p106 = scmp.eq.s32.totalorder %s21, 1
      %p107 = por %p105, %p106
      %p109 = scmp.ne.s32.totalorder %s94, %s108
      %p110 = scmp.eq.s32.totalorder %s21, 0
      %p111 = por %p109, %p110
      %s113 = sadd.s32 %s112, 1
      %p116 = scmp.eq.s32.totalorder %s15, 1
      %p117 = scmp.ne.s32.totalorder %s112, %s114
      %p118 = scmp.eq.s32.totalorder %s15, 0
      %p119 = por %p117, %p118
      %p120 = scmp.ne.s32.totalorder %s112, %s114
      %p121 = scmp.eq.s32.totalorder %s20, 1
      %p122 = por %p120, %p121
      %p123 = scmp.ne.s32.totalorder %s114, %s115
      %p124 = scmp.eq.s32.totalorder %s20, 0
      %p125 = por %p123, %p124
      %p126 = scmp.ne.s32.totalorder %s114, %s115
      %p127 = scmp.eq.s32.totalorder %s21, 1
      %p128 = por %p126, %p127
      %p130 = scmp.ne.s32.totalorder %s115, %s129
      %p131 = scmp.eq.s32.totalorder %s21, 0
      %p132 = por %p130, %p131
      %s133 = ssub.s32 %s15, %s22
      %p134 = scmp.eq.s32.totalorder %s133, 0
      %s136 = sadd.s32 %s135, 1
      %s137 = scalar_select %p134, %s135, %s136
      %p140 = pneg %p134
      %p141 = scmp.eq.s32.totalorder %s15, 1
      %p142 = por %p140, %p141
      %p143 = scmp.ne.s32.totalorder %s135, %s138
      %p144 = scmp.eq.s32.totalorder %s15, 0
      %p145 = por %p143, %p144
      %p146 = scmp.ne.s32.totalorder %s135, %s138
      %p147 = scmp.eq.s32.totalorder %s20, 1
      %p148 = por %p146, %p147
      %p149 = scmp.ne.s32.totalorder %s138, %s139
      %p150 = scmp.eq.s32.totalorder %s20, 0
      %p151 = por %p149, %p150
      %p152 = scmp.ne.s32.totalorder %s138, %s139
      %p153 = scmp.eq.s32.totalorder %s21, 1
      %p154 = por %p152, %p153
      %p156 = scmp.ne.s32.totalorder %s139, %s155
      %p157 = scmp.eq.s32.totalorder %s21, 0
      %p158 = por %p156, %p157
      %p159 = scmp.le.s32.totalorder 1, %s15
      %p160 = scmp.lt.s32.totalorder %s15, 3
      %p161 = pnand %p159, %p160
      %p162 = pneg %p161
      // Predicated region
      $region9: #{tpu_custom_call.1} parent=5 // pred_check
        _
      $region10: #{tpu_custom_call.1} parent=5 // pred_check_branch
        %164 = sbr.rel (%p161) target = $region12
      $region11: #{tpu_custom_call.1} parent=5 // pred_region
        %s165 = ssub.s32 %s15, 1
        // Predicated region
        $region13: #{tpu_custom_call.1} parent=11 // pred_check
          %p166 = pneg %p62
        $region14: #{tpu_custom_call.1} parent=11 // pred_check_branch
          %168 = sbr.rel (%p166) target = $region16
        $region15: #{tpu_custom_call.1} parent=11 // pred_region
          _
        $region16: #{tpu_custom_call.1} parent=11 // pred_fallthru
          _
        // Predicated region
        $region17: #{tpu_custom_call.1} parent=11 // pred_check
          %p169 = pneg %p83
        $region18: #{tpu_custom_call.1} parent=11 // pred_check_branch
          %171 = sbr.rel (%p169) target = $region20
        $region19: #{tpu_custom_call.1} parent=11 // pred_region
          _
        $region20: #{tpu_custom_call.1} parent=11 // pred_fallthru
          _
        // Predicated region
        $region21: #{tpu_custom_call.1} parent=11 // pred_check
          %p172 = pneg %p104
        $region22: #{tpu_custom_call.1} parent=11 // pred_check_branch
          %174 = sbr.rel (%p172) target = $region24
        $region23: #{tpu_custom_call.1} parent=11 // pred_region
          %176 = vsyncadd [#allocation3], 0
          %s177 = sshll.u32 %s3, 4
          %s178 = int_to_ptr.hbm [resolvable:$true] %s177
          %s179 = sshll.u32 [#allocation2], 4
          %s180 = int_to_ptr.vmem [resolvable:$true] %s179
          %185 = dma.hbm_to_vmem [thread:$0]  %s178, 2048, %s180, [#allocation3], 128, 128, 8
        $region24: #{tpu_custom_call.1} parent=11 // pred_fallthru
          _
        // Predicated region
        $region25: #{tpu_custom_call.1} parent=11 // pred_check
          %p186 = pneg %p125
        $region26: #{tpu_custom_call.1} parent=11 // pred_check_branch
          %188 = sbr.rel (%p186) target = $region28
        $region27: #{tpu_custom_call.1} parent=11 // pred_region
          _
        $region28: #{tpu_custom_call.1} parent=11 // pred_fallthru
          _
      $region12: #{tpu_custom_call.1} parent=5 // pred_fallthru
        _
      %p189 = scmp.lt.s32.totalorder %s15, 2
      // Predicated region
      $region29: #{tpu_custom_call.1} parent=5 // pred_check
        %p190 = pneg %p189
      $region30: #{tpu_custom_call.1} parent=5 // pred_check_branch
        %192 = sbr.rel (%p190) target = $region32
      $region31: #{tpu_custom_call.1} parent=5 // pred_region
        // Predicated region
        $region33: #{tpu_custom_call.1} parent=31 // pred_check
          %p193 = pneg %p35
        $region34: #{tpu_custom_call.1} parent=31 // pred_check_branch
          %195 = sbr.rel (%p193) target = $region36
        $region35: #{tpu_custom_call.1} parent=31 // pred_region
          %s196 = smul.u32 16, %s15
          %p197 = scmp.lt.s32.totalorder %s196, 31
          %s198 = scalar_select %p197, %s196, 31
          %s199 = smul.addr %s198, 8
          %s200 = scalar_lea.vmem %s0, %s199
          %s201 = smul.u32 16, %s15
        $region36: #{tpu_custom_call.1} parent=31 // pred_fallthru
          _
      $region32: #{tpu_custom_call.1} parent=5 // pred_fallthru
        _
      %p202 = scmp.le.s32.totalorder 1, %s15
      %p203 = scmp.lt.s32.totalorder %s15, 3
      %p204 = pnand %p202, %p203
      %p205 = pneg %p204
      // Predicated region
      $region37: #{tpu_custom_call.1} parent=5 // pred_check
        _
      $region38: #{tpu_custom_call.1} parent=5 // pred_check_branch
        %207 = sbr.rel (%p204) target = $region40
      $region39: #{tpu_custom_call.1} parent=5 // pred_region
        %s208 = ssub.s32 %s15, 1
        // Predicated region
        $region41: #{tpu_custom_call.1} parent=39 // pred_check
          %p209 = pneg %p104
        $region42: #{tpu_custom_call.1} parent=39 // pred_check_branch
          %211 = sbr.rel (%p209) target = $region44
        $region43: #{tpu_custom_call.1} parent=39 // pred_region
          %213 = dma.done [#allocation3], 2048
        $region44: #{tpu_custom_call.1} parent=39 // pred_fallthru
          _
        %s214 = smul.u32 16, %s20
        %p215 = scmp.lt.s32.totalorder %s214, 31
        %s216 = scalar_select %p215, %s214, 31
        %s217 = smul.addr %s216, 8
        %s218 = scalar_lea.vmem %s0, %s217
        %p219 = pneg %p41
        %p220 = pneg %p38
        %p221 = pneg %p62
        %p222 = pneg %p59
        %p223 = pneg %p83
        %p224 = pneg %p80
        %p225 = pneg %p104
        %p226 = pneg %p101
        %p227 = pneg %p125
        %p228 = pneg %p122
        %p229 = pneg %p151
        %p230 = pneg %p148
        %s231 = sand.u32 %s138, 1
        %s232 = scalar_lea.sflag [#allocation4], %s231
        %s233 = sand.u32 %s138, 1
        %s234 = smul.addr %s233, 128
        %s235 = scalar_lea.vmem [#allocation5], %s234
        %s236 = smul.u32 16, %s20
        %p237 = scmp.lt.s32.totalorder %s236, 31
        %s238 = scalar_select %p237, %s236, 31
        %s239 = smul.addr %s238, 8
        %s240 = scalar_lea.vmem %s0, %s239
        %s241 = smul.u32 16, %s20
        %s242 = smul.u32 16, %s20
        %v243 = vld [vmem:[%s240] sm:$0xff]
        %v244 = vld [vmem:[%s240 + $0x8] sm:$0xff]
        %v245 = vld [vmem:[%s240 + $0x10] sm:$0xff]
        %v246 = vld [vmem:[%s240 + $0x18] sm:$0xff]
        %v247 = vld [vmem:[%s240 + $0x20] sm:$0xff]
        %v248 = vld [vmem:[%s240 + $0x28] sm:$0xff]
        %v249 = vld [vmem:[%s240 + $0x30] sm:$0xff]
        %v250 = vld [vmem:[%s240 + $0x38] sm:$0xff]
        %v251 = vld [vmem:[%s240 + $0x40] sm:$0xff]
        %v252 = vld [vmem:[%s240 + $0x48] sm:$0xff]
        %v253 = vld [vmem:[%s240 + $0x50] sm:$0xff]
        %v254 = vld [vmem:[%s240 + $0x58] sm:$0xff]
        %v255 = vld [vmem:[%s240 + $0x60] sm:$0xff]
        %v256 = vld [vmem:[%s240 + $0x68] sm:$0xff]
        %v257 = vld [vmem:[%s240 + $0x70] sm:$0xff]
        %v258 = vld [vmem:[%s240 + $0x78] sm:$0xff]
        %v259 = vld [vmem:[%s1] sm:$0xff]
        %v260 = vld [vmem:[%s1 + $0x8] sm:$0xff]
        %v261 = vld [vmem:[%s1 + $0x10] sm:$0xff]
        %v262 = vld [vmem:[%s1 + $0x18] sm:$0xff]
        %v263 = vld [vmem:[%s2] sm:$0x1]
        %v265 = vperm.slane %v263, 0
        %vm267 = vcmask 261120
        %v269 = vsel %vm267, %v243, 0
        %v272 = vsel %vm267, %v244, 0
        %v275 = vsel %vm267, %v245, 0
        %v278 = vsel %vm267, %v246, 0
        %v281 = vsel %vm267, %v247, 0
        %v284 = vsel %vm267, %v248, 0
        %v287 = vsel %vm267, %v249, 0
        %v290 = vsel %vm267, %v250, 0
        %v293 = vsel %vm267, %v251, 0
        %v296 = vsel %vm267, %v252, 0
        %v299 = vsel %vm267, %v253, 0
        %v302 = vsel %vm267, %v254, 0
        %v305 = vsel %vm267, %v255, 0
        %v308 = vsel %vm267, %v256, 0
        %v311 = vsel %vm267, %v257, 0
        %v314 = vsel %vm267, %v258, 0
        %316 = vmatpush.msra.mxu0 0.0
        %317 = vmatpush.msra.mxu0 0.0
        %318 = vmatpush.msra.mxu0 0.0
        %319 = vmatpush.msra.mxu0 0.0
        %320 = vmatpush.msra.mxu0 0.0
        %321 = vmatpush.msra.mxu0 0.0
        %322 = vmatpush.msra.mxu0 0.0
        %323 = vmatpush.msra.mxu0 0.0
        %324 = vmatpush.msra.mxu0 0.0
        %325 = vmatpush.msra.mxu0 0.0
        %326 = vmatpush.msra.mxu0 0.0
        %327 = vmatpush.msra.mxu0 0.0
        %328 = vmatpush.msra.mxu0 %v262
        %329 = vmatpush.msra.mxu0 %v261
        %330 = vmatpush.msra.mxu0 %v260
        %331 = vmatpush.msra.mxu0 %v259
        %332 = vmatmul.f32.gmra.mxu0 %v269
        %v333 = vpop.f32.mrf.mxu0
        %v334 = vadd.f32 %v265, %v333
        %335 = vmatmul.f32.gmra.mxu0 %v272
        %v336 = vpop.f32.mrf.mxu0
        %v337 = vadd.f32 %v265, %v336
        %338 = vmatmul.f32.gmra.mxu0 %v275
        %v339 = vpop.f32.mrf.mxu0
        %v340 = vadd.f32 %v265, %v339
        %341 = vmatmul.f32.gmra.mxu0 %v278
        %v342 = vpop.f32.mrf.mxu0
        %v343 = vadd.f32 %v265, %v342
        %344 = vmatmul.f32.gmra.mxu0 %v281
        %v345 = vpop.f32.mrf.mxu0
        %v346 = vadd.f32 %v265, %v345
        %347 = vmatmul.f32.gmra.mxu0 %v284
        %v348 = vpop.f32.mrf.mxu0
        %v349 = vadd.f32 %v265, %v348
        %350 = vmatmul.f32.gmra.mxu0 %v287
        %v351 = vpop.f32.mrf.mxu0
        %v352 = vadd.f32 %v265, %v351
        %353 = vmatmul.f32.gmra.mxu0 %v290
        %v354 = vpop.f32.mrf.mxu0
        %v355 = vadd.f32 %v265, %v354
        %356 = vmatmul.f32.gmra.mxu0 %v293
        %v357 = vpop.f32.mrf.mxu0
        %v358 = vadd.f32 %v265, %v357
        %359 = vmatmul.f32.gmra.mxu0 %v296
        %v360 = vpop.f32.mrf.mxu0
        %v361 = vadd.f32 %v265, %v360
        %362 = vmatmul.f32.gmra.mxu0 %v299
        %v363 = vpop.f32.mrf.mxu0
        %v364 = vadd.f32 %v265, %v363
        %365 = vmatmul.f32.gmra.mxu0 %v302
        %v366 = vpop.f32.mrf.mxu0
        %v367 = vadd.f32 %v265, %v366
        %368 = vmatmul.f32.gmra.mxu0 %v305
        %v369 = vpop.f32.mrf.mxu0
        %v370 = vadd.f32 %v265, %v369
        %371 = vmatmul.f32.gmra.mxu0 %v308
        %v372 = vpop.f32.mrf.mxu0
        %v373 = vadd.f32 %v265, %v372
        %374 = vmatmul.f32.gmra.mxu0 %v311
        %v375 = vpop.f32.mrf.mxu0
        %v376 = vadd.f32 %v265, %v375
        %377 = vmatmul.f32.gmra.mxu0 %v314
        %v378 = vpop.f32.mrf.mxu0
        %v379 = vadd.f32 %v265, %v378
        %380 = vdwg.mxu0
        %v381 = vmax.f32 %v334, 0.0
        %v382 = vmax.f32 %v337, 0.0
        %v383 = vmax.f32 %v340, 0.0
        %v384 = vmax.f32 %v343, 0.0
        %v385 = vmax.f32 %v346, 0.0
        %v386 = vmax.f32 %v349, 0.0
        %v387 = vmax.f32 %v352, 0.0
        %v388 = vmax.f32 %v355, 0.0
        %v389 = vmax.f32 %v358, 0.0
        %v390 = vmax.f32 %v361, 0.0
        %v391 = vmax.f32 %v364, 0.0
        %v392 = vmax.f32 %v367, 0.0
        %v393 = vmax.f32 %v370, 0.0
        %v394 = vmax.f32 %v373, 0.0
        %v395 = vmax.f32 %v376, 0.0
        %v396 = vmax.f32 %v379, 0.0
        %s397 = scalar_lea.vmem %s1, 128
        %v398 = vld [vmem:[%s397] sm:$0xff]
        %v399 = vld [vmem:[%s397 + $0x8] sm:$0xff]
        %v400 = vld [vmem:[%s397 + $0x10] sm:$0xff]
        %v401 = vld [vmem:[%s397 + $0x18] sm:$0xff]
        %v402 = vld [vmem:[%s397 + $0x20] sm:$0xff]
        %v403 = vld [vmem:[%s397 + $0x28] sm:$0xff]
        %v404 = vld [vmem:[%s397 + $0x30] sm:$0xff]
        %v405 = vld [vmem:[%s397 + $0x38] sm:$0xff]
        %v406 = vld [vmem:[%s397 + $0x40] sm:$0xff]
        %v407 = vld [vmem:[%s397 + $0x48] sm:$0xff]
        %v408 = vld [vmem:[%s397 + $0x50] sm:$0xff]
        %v409 = vld [vmem:[%s397 + $0x58] sm:$0xff]
        %v410 = vld [vmem:[%s397 + $0x60] sm:$0xff]
        %v411 = vld [vmem:[%s397 + $0x68] sm:$0xff]
        %v412 = vld [vmem:[%s397 + $0x70] sm:$0xff]
        %v413 = vld [vmem:[%s397 + $0x78] sm:$0xff]
        %s414 = scalar_lea.vmem %s2, 1
        %v415 = vld [vmem:[%s414] sm:$0x1]
        %v417 = vperm.slane %v415, 0
        %419 = vmatpush.msra.mxu0 %v413
        %420 = vmatpush.msra.mxu0 %v412
        %421 = vmatpush.msra.mxu0 %v411
        %422 = vmatpush.msra.mxu0 %v410
        %423 = vmatpush.msra.mxu0 %v409
        %424 = vmatpush.msra.mxu0 %v408
        %425 = vmatpush.msra.mxu0 %v407
        %426 = vmatpush.msra.mxu0 %v406
        %427 = vmatpush.msra.mxu0 %v405
        %428 = vmatpush.msra.mxu0 %v404
        %429 = vmatpush.msra.mxu0 %v403
        %430 = vmatpush.msra.mxu0 %v402
        %431 = vmatpush.msra.mxu0 %v401
        %432 = vmatpush.msra.mxu0 %v400
        %433 = vmatpush.msra.mxu0 %v399
        %434 = vmatpush.msra.mxu0 %v398
        %435 = vmatmul.f32.gmra.mxu0 %v381
        %v436 = vpop.f32.mrf.mxu0
        %v437 = vadd.f32 %v417, %v436
        %438 = vmatmul.f32.gmra.mxu0 %v382
        %v439 = vpop.f32.mrf.mxu0
        %v440 = vadd.f32 %v417, %v439
        %441 = vmatmul.f32.gmra.mxu0 %v383
        %v442 = vpop.f32.mrf.mxu0
        %v443 = vadd.f32 %v417, %v442
        %444 = vmatmul.f32.gmra.mxu0 %v384
        %v445 = vpop.f32.mrf.mxu0
        %v446 = vadd.f32 %v417, %v445
        %447 = vmatmul.f32.gmra.mxu0 %v385
        %v448 = vpop.f32.mrf.mxu0
        %v449 = vadd.f32 %v417, %v448
        %450 = vmatmul.f32.gmra.mxu0 %v386
        %v451 = vpop.f32.mrf.mxu0
        %v452 = vadd.f32 %v417, %v451
        %453 = vmatmul.f32.gmra.mxu0 %v387
        %v454 = vpop.f32.mrf.mxu0
        %v455 = vadd.f32 %v417, %v454
        %456 = vmatmul.f32.gmra.mxu0 %v388
        %v457 = vpop.f32.mrf.mxu0
        %v458 = vadd.f32 %v417, %v457
        %459 = vmatmul.f32.gmra.mxu0 %v389
        %v460 = vpop.f32.mrf.mxu0
        %v461 = vadd.f32 %v417, %v460
        %462 = vmatmul.f32.gmra.mxu0 %v390
        %v463 = vpop.f32.mrf.mxu0
        %v464 = vadd.f32 %v417, %v463
        %465 = vmatmul.f32.gmra.mxu0 %v391
        %v466 = vpop.f32.mrf.mxu0
        %v467 = vadd.f32 %v417, %v466
        %468 = vmatmul.f32.gmra.mxu0 %v392
        %v469 = vpop.f32.mrf.mxu0
        %v470 = vadd.f32 %v417, %v469
        %471 = vmatmul.f32.gmra.mxu0 %v393
        %v472 = vpop.f32.mrf.mxu0
        %v473 = vadd.f32 %v417, %v472
        %474 = vmatmul.f32.gmra.mxu0 %v394
        %v475 = vpop.f32.mrf.mxu0
        %v476 = vadd.f32 %v417, %v475
        %477 = vmatmul.f32.gmra.mxu0 %v395
        %v478 = vpop.f32.mrf.mxu0
        %v479 = vadd.f32 %v417, %v478
        %480 = vmatmul.f32.gmra.mxu0 %v396
        %v481 = vpop.f32.mrf.mxu0
        %v482 = vadd.f32 %v417, %v481
        %483 = vdwg.mxu0
        %v484 = vmax.f32 %v437, 0.0
        %v485 = vmax.f32 %v440, 0.0
        %v486 = vmax.f32 %v443, 0.0
        %v487 = vmax.f32 %v446, 0.0
        %v488 = vmax.f32 %v449, 0.0
        %v489 = vmax.f32 %v452, 0.0
        %v490 = vmax.f32 %v455, 0.0
        %v491 = vmax.f32 %v458, 0.0
        %v492 = vmax.f32 %v461, 0.0
        %v493 = vmax.f32 %v464, 0.0
        %v494 = vmax.f32 %v467, 0.0
        %v495 = vmax.f32 %v470, 0.0
        %v496 = vmax.f32 %v473, 0.0
        %v497 = vmax.f32 %v476, 0.0
        %v498 = vmax.f32 %v479, 0.0
        %v499 = vmax.f32 %v482, 0.0
        %v500 = vld [vmem:[#allocation2] sm:$0xff]
        %v501 = vld [vmem:[#allocation2 + $0x8] sm:$0xff]
        %v502 = vld [vmem:[#allocation2 + $0x10] sm:$0xff]
        %v503 = vld [vmem:[#allocation2 + $0x18] sm:$0xff]
        %v504 = vld [vmem:[#allocation2 + $0x20] sm:$0xff]
        %v505 = vld [vmem:[#allocation2 + $0x28] sm:$0xff]
        %v506 = vld [vmem:[#allocation2 + $0x30] sm:$0xff]
        %v507 = vld [vmem:[#allocation2 + $0x38] sm:$0xff]
        %v508 = vld [vmem:[#allocation2 + $0x40] sm:$0xff]
        %v509 = vld [vmem:[#allocation2 + $0x48] sm:$0xff]
        %v510 = vld [vmem:[#allocation2 + $0x50] sm:$0xff]
        %v511 = vld [vmem:[#allocation2 + $0x58] sm:$0xff]
        %v512 = vld [vmem:[#allocation2 + $0x60] sm:$0xff]
        %v513 = vld [vmem:[#allocation2 + $0x68] sm:$0xff]
        %v514 = vld [vmem:[#allocation2 + $0x70] sm:$0xff]
        %v515 = vld [vmem:[#allocation2 + $0x78] sm:$0xff]
        %v516 = vld [vmem:[%s4] sm:$0x1]
        %v518 = vperm.slane %v516, 0
        %520 = vmatpush.msra.mxu0 %v515
        %521 = vmatpush.msra.mxu0 %v514
        %522 = vmatpush.msra.mxu0 %v513
        %523 = vmatpush.msra.mxu0 %v512
        %524 = vmatpush.msra.mxu0 %v511
        %525 = vmatpush.msra.mxu0 %v510
        %526 = vmatpush.msra.mxu0 %v509
        %527 = vmatpush.msra.mxu0 %v508
        %528 = vmatpush.msra.mxu0 %v507
        %529 = vmatpush.msra.mxu0 %v506
        %530 = vmatpush.msra.mxu0 %v505
        %531 = vmatpush.msra.mxu0 %v504
        %532 = vmatpush.msra.mxu0 %v503
        %533 = vmatpush.msra.mxu0 %v502
        %534 = vmatpush.msra.mxu0 %v501
        %535 = vmatpush.msra.mxu0 %v500
        %536 = vmatmul.f32.gmra.mxu0 %v484
        %v537 = vpop.f32.mrf.mxu0
        %v538 = vadd.f32 %v518, %v537
        %539 = vmatmul.f32.gmra.mxu0 %v485
        %v540 = vpop.f32.mrf.mxu0
        %v541 = vadd.f32 %v518, %v540
        %542 = vmatmul.f32.gmra.mxu0 %v486
        %v543 = vpop.f32.mrf.mxu0
        %v544 = vadd.f32 %v518, %v543
        %545 = vmatmul.f32.gmra.mxu0 %v487
        %v546 = vpop.f32.mrf.mxu0
        %v547 = vadd.f32 %v518, %v546
        %548 = vmatmul.f32.gmra.mxu0 %v488
        %v549 = vpop.f32.mrf.mxu0
        %v550 = vadd.f32 %v518, %v549
        %551 = vmatmul.f32.gmra.mxu0 %v489
        %v552 = vpop.f32.mrf.mxu0
        %v553 = vadd.f32 %v518, %v552
        %554 = vmatmul.f32.gmra.mxu0 %v490
        %v555 = vpop.f32.mrf.mxu0
        %v556 = vadd.f32 %v518, %v555
        %557 = vmatmul.f32.gmra.mxu0 %v491
        %v558 = vpop.f32.mrf.mxu0
        %v559 = vadd.f32 %v518, %v558
        %560 = vmatmul.f32.gmra.mxu0 %v492
        %v561 = vpop.f32.mrf.mxu0
        %v562 = vadd.f32 %v518, %v561
        %563 = vmatmul.f32.gmra.mxu0 %v493
        %v564 = vpop.f32.mrf.mxu0
        %v565 = vadd.f32 %v518, %v564
        %566 = vmatmul.f32.gmra.mxu0 %v494
        %v567 = vpop.f32.mrf.mxu0
        %v568 = vadd.f32 %v518, %v567
        %569 = vmatmul.f32.gmra.mxu0 %v495
        %v570 = vpop.f32.mrf.mxu0
        %v571 = vadd.f32 %v518, %v570
        %572 = vmatmul.f32.gmra.mxu0 %v496
        %v573 = vpop.f32.mrf.mxu0
        %v574 = vadd.f32 %v518, %v573
        %575 = vmatmul.f32.gmra.mxu0 %v497
        %v576 = vpop.f32.mrf.mxu0
        %v577 = vadd.f32 %v518, %v576
        %578 = vmatmul.f32.gmra.mxu0 %v498
        %v579 = vpop.f32.mrf.mxu0
        %v580 = vadd.f32 %v518, %v579
        %581 = vmatmul.f32.gmra.mxu0 %v499
        %v582 = vpop.f32.mrf.mxu0
        %v583 = vadd.f32 %v518, %v582
        %584 = vdwg.mxu0
        %585 = vst [vmem:[%s235] sm:$0xff] %v538
        %586 = vst [vmem:[%s235 + $0x8] sm:$0xff] %v541
        %587 = vst [vmem:[%s235 + $0x10] sm:$0xff] %v544
        %588 = vst [vmem:[%s235 + $0x18] sm:$0xff] %v547
        %589 = vst [vmem:[%s235 + $0x20] sm:$0xff] %v550
        %590 = vst [vmem:[%s235 + $0x28] sm:$0xff] %v553
        %591 = vst [vmem:[%s235 + $0x30] sm:$0xff] %v556
        %592 = vst [vmem:[%s235 + $0x38] sm:$0xff] %v559
        %593 = vst [vmem:[%s235 + $0x40] sm:$0xff] %v562
        %594 = vst [vmem:[%s235 + $0x48] sm:$0xff] %v565
        %595 = vst [vmem:[%s235 + $0x50] sm:$0xff] %v568
        %596 = vst [vmem:[%s235 + $0x58] sm:$0xff] %v571
        %597 = vst [vmem:[%s235 + $0x60] sm:$0xff] %v574
        %598 = vst [vmem:[%s235 + $0x68] sm:$0xff] %v577
        %599 = vst [vmem:[%s235 + $0x70] sm:$0xff] %v580
        %600 = vst [vmem:[%s235 + $0x78] sm:$0xff] %v583
        %s601 = sand.u32 %s138, 1
        %s602 = scalar_lea.sflag [#allocation4], %s601
        %s603 = sand.u32 %s138, 1
        %s604 = smul.addr %s603, 128
        %s605 = scalar_lea.vmem [#allocation5], %s604
        // Predicated region
        $region45: #{tpu_custom_call.1} parent=39 // pred_check
          %p606 = pneg %p148
        $region46: #{tpu_custom_call.1} parent=39 // pred_check_branch
          %608 = sbr.rel (%p606) target = $region48
        $region47: #{tpu_custom_call.1} parent=39 // pred_region
          %s609 = smul.u32 16, %s20
          %611 = vsyncadd %s602, 0
          %s612 = smul.addr %s609, 8
          %s613 = scalar_lea.hbm %s5, %s612
          %s614 = sshll.u32 %s605, 4
          %s615 = int_to_ptr.vmem [resolvable:$true] %s614
          %s616 = sshll.u32 %s613, 4
          %s617 = int_to_ptr.hbm [resolvable:$true] %s616
          %622 = dma.vmem_to_hbm [thread:$0]  %s615, 2048, %s617, %s602, 128, 128, 8
        $region48: #{tpu_custom_call.1} parent=39 // pred_fallthru
          _
      $region40: #{tpu_custom_call.1} parent=5 // pred_fallthru
        _
      %p623 = scmp.le.s32.totalorder 2, %s15
      // Predicated region
      $region49: #{tpu_custom_call.1} parent=5 // pred_check
        %p624 = pneg %p623
      $region50: #{tpu_custom_call.1} parent=5 // pred_check_branch
        %626 = sbr.rel (%p624) target = $region52
      $region51: #{tpu_custom_call.1} parent=5 // pred_region
        %s627 = ssub.s32 %s15, 2
        // Predicated region
        $region53: #{tpu_custom_call.1} parent=51 // pred_check
          %p628 = pneg %p154
        $region54: #{tpu_custom_call.1} parent=51 // pred_check_branch
          %630 = sbr.rel (%p628) target = $region56
        $region55: #{tpu_custom_call.1} parent=51 // pred_region
          %s631 = sand.u32 %s139, 1
          %s632 = scalar_lea.sflag [#allocation4], %s631
          %s633 = sand.u32 %s139, 1
          %s634 = smul.addr %s633, 128
          %s635 = scalar_lea.vmem [#allocation5], %s634
          %637 = dma.done %s632, 2048
        $region56: #{tpu_custom_call.1} parent=51 // pred_fallthru
          _
      $region52: #{tpu_custom_call.1} parent=5 // pred_fallthru
        _
    $region6: #{tpu_custom_call.1} parent=1 // loop_footer
      %s19 = sadd.s32 1, %s15
    $region7: #{tpu_custom_call.1} parent=1 // loop_footer_branch
      %14 = sbr.rel target = $region3
    $region8: #{tpu_custom_call.1} parent=1 // loop_exit
      _
    %638 = vsyncpa [#allocation3], 1
    %s639 = scalar_lea.sflag [#allocation3], 1
    %640 = vsyncpa %s639, 1
    %641 = vsyncpa [#allocation4], 1
    %s642 = scalar_lea.sflag [#allocation4], 1
    %643 = vsyncpa %s642, 1

</llo_original>
